<compile_context>
chip_gen: v7x
topology: tpu7x:2x2x1
jax: 0.10.0
libtpu: 0.0.40
codegen_flags: <defaults>
</compile_context>

<pallas_src>
import functools

import jax
import jax.numpy as jnp
from jax.experimental import pallas as pl
from jax.experimental.pallas import tpu as pltpu


KH, KW = 12, 24          # input_gate kernel size
SH, SW = 1, 2            # input_gate strides
OC_PAD = 128             # pad 64 output channels to a full 128-lane store
VMEM_LIMIT = 32 * 1024 * 1024
VMEM_BUDGET = 20 * 1024 * 1024


def _round_up(x, m):
    return (x + m - 1) // m * m


def _conv_slab_kernel(xw_ref, w_ref, b_ref, o_ref, acc_ref, *,
                      tile_h, w_out_p, ckw, oc_p, kh):
    # xw_ref : (1, H_pad, W_out_p, CKW)     bf16  (whole padded height, one batch)
    # w_ref  : (KH, CKW, OC_PAD)            bf16  (per-kernel-row weight slabs)
    # b_ref  : (1, OC_PAD)                  f32
    # o_ref  : (1, TILE_H, W_out_p, OC_PAD) f32
    # acc_ref: (TILE_H * W_out_p, OC_PAD)   f32 scratch accumulator
    t = pl.program_id(1)
    h0 = pl.multiple_of(t * tile_h, tile_h)

    acc_ref[...] = jnp.broadcast_to(b_ref[...], acc_ref.shape)   # init with bias
    for i in range(kh):                                          # 12 static matmuls
        lhs = xw_ref[0, pl.ds(h0 + i, tile_h)]                   # (TILE_H, W_out_p, CKW)
        lhs = lhs.reshape(tile_h * w_out_p, ckw)                 # free: W_out_p % 8 == 0
        acc_ref[...] += jnp.dot(lhs, w_ref[i],
                                preferred_element_type=jnp.float32)
    o_ref[...] = acc_ref[...].reshape(1, tile_h, w_out_p, oc_p)


@jax.jit
def input_gate_conv(x, weight, bias):
    """Conv2d(3->64, kernel=(12,24), stride=(1,2), padding=0), NCHW in/out."""
    B, C, H, W = x.shape
    OC = weight.shape[0]
    H_out = (H - KH) // SH + 1
    W_out = (W - KW) // SW + 1
    CKW = C * KW

    # ---- W-direction im2col only (12x, not 144x), channels-last --------------
    cols = [x[:, :, :, j::SW][..., :W_out] for j in range(KW)]   # (B,C,H,W_out) each
    xw = jnp.stack(cols, axis=-1)                                # (B, C, H, W_out, KW)
    xw = jnp.transpose(xw, (0, 2, 3, 1, 4))                      # (B, H, W_out, C, KW)
    xw = xw.reshape(B, H, W_out, CKW)

    # ---- padding / tiling -----------------------------------------------------
    W_out_p = _round_up(W_out, 8)                    # clean sublane dim

    # VMEM budget: input block (x2 buf, whole padded height) + weights (x2)
    # are fixed; output block (x2 buf) + f32 scratch scale with tile_h.
    fixed_bytes = (2 * (H_out + 2 * KH) * W_out_p * CKW * 2
                   + 2 * KH * CKW * OC_PAD * 2)
    per_row_bytes = W_out_p * OC_PAD * 4 * 3         # out block x2 + scratch
    budget_rows = max(1, (VMEM_BUDGET - fixed_bytes) // per_row_bytes)
    tile_h = max(1, min(H_out, max(1, 2048 // W_out_p), budget_rows))

    H_out_p = _round_up(H_out, tile_h)
    H_pad = H_out_p + KH - 1                         # rows incl. KH-1 halo
    num_t = H_out_p // tile_h

    xw = jnp.pad(xw, ((0, 0), (0, H_pad - H), (0, W_out_p - W_out), (0, 0)))
    xw = xw.astype(jnp.bfloat16)

    # weight (OC, C, KH, KW) -> (KH, C*KW, OC_PAD) slabs; bias -> (1, OC_PAD)
    w_slabs = jnp.transpose(weight, (2, 1, 3, 0)).reshape(KH, CKW, OC)
    w_slabs = jnp.pad(w_slabs, ((0, 0), (0, 0), (0, OC_PAD - OC))).astype(jnp.bfloat16)
    b_row = jnp.pad(bias.astype(jnp.float32), (0, OC_PAD - OC)).reshape(1, OC_PAD)

    kernel = functools.partial(_conv_slab_kernel, tile_h=tile_h, w_out_p=W_out_p,
                               ckw=CKW, oc_p=OC_PAD, kh=KH)

    out = pl.pallas_call(
        kernel,
        out_shape=jax.ShapeDtypeStruct((B, H_out_p, W_out_p, OC_PAD), jnp.float32),
        grid=(B, num_t),
        in_specs=[
            pl.BlockSpec((1, H_pad, W_out_p, CKW), lambda b, t: (b, 0, 0, 0)),
            pl.BlockSpec((KH, CKW, OC_PAD), lambda b, t: (0, 0, 0)),
            pl.BlockSpec((1, OC_PAD), lambda b, t: (0, 0)),
        ],
        out_specs=pl.BlockSpec((1, tile_h, W_out_p, OC_PAD),
                               lambda b, t: (b, t, 0, 0)),
        scratch_shapes=[pltpu.VMEM((tile_h * W_out_p, OC_PAD), jnp.float32)],
        compiler_params=pltpu.CompilerParams(
            dimension_semantics=("parallel", "parallel"),
            vmem_limit_bytes=VMEM_LIMIT,
        ),
        cost_estimate=pl.CostEstimate(
            flops=2 * B * H_out_p * W_out_p * CKW * KH * OC_PAD,
            transcendentals=0,
            bytes_accessed=(xw.size * 2 + w_slabs.size * 2
                            + B * H_out_p * W_out_p * OC_PAD * 4),
        ),
    )(xw, w_slabs, b_row)

    # ---- slice padding off, back to NCHW --------------------------------------
    out = out[:, :H_out, :W_out, :OC]
    return jnp.transpose(out, (0, 3, 1, 2))          # (B, 64, H_out, W_out)


def ser_vit_forward(x, params):
    """Replicates SER_VIT.forward up to the point where it raises."""
    # print(x.shape) in the original
    y = input_gate_conv(x, params["input_gate_w"], params["input_gate_b"])
    # print(y.shape); raise Exception  -> remaining ViT path is unreachable
    return y


# ---------------------------------------------------------------------------
# Deterministic synthetic parameters (shapes from SER_VIT.__init__)
# ---------------------------------------------------------------------------
def make_params(key):
    k1, k2 = jax.random.split(key)
    IC, OC = 3, 64
    fan_in = IC * KH * KW
    fan_out = OC * KH * KW
    limit = jnp.sqrt(6.0 / (fan_in + fan_out))       # xavier-style, deterministic
    w = jax.random.uniform(k1, (OC, IC, KH, KW), jnp.float32, -limit, limit)
    b = 0.01 * jax.random.normal(k2, (OC,), jnp.float32)
    # out_cls (Linear 1000 -> num_classes) exists in __init__ but is never
    # reached in forward; not materialized here.
    return {"input_gate_w": w, "input_gate_b": b}


if __name__ == "__main__":
    key = jax.random.PRNGKey(0)
    kx, kp = jax.random.split(key)

    # Small NCHW input consistent with Conv2d(3, 64, kernel=(12,24), stride=(1,2))
    B, C, H, W = 2, 3, 16, 32
    x = jax.random.normal(kx, (B, C, H, W), jnp.float32)
    params = make_params(kp)

    out = ser_vit_forward(x, params)
    out = jax.block_until_ready(out)

    H_out, W_out = (H - KH) // SH + 1, (W - KW) // SW + 1
    ref = jax.lax.conv_general_dilated(
        x,
        params["input_gate_w"],
        window_strides=(SH, SW),
        padding="VALID",
        dimension_numbers=("NCHW", "OIHW", "NCHW"),
    ) + params["input_gate_b"].reshape(1, -1, 1, 1)

    assert out.shape == (B, 64, H_out, W_out), out.shape
    max_err = float(jnp.max(jnp.abs(out - ref)))
    # bf16 inputs / f32 accumulation: a few e-3 absolute error is expected
    assert jnp.allclose(out, ref, atol=3e-2, rtol=3e-2), max_err
    print("KERNEL_OK")
</pallas_src>

<mosaic_0001>
module attributes {stable_mosaic.version = 11 : i64} {
  func.func @_conv_slab_kernel(%arg0: i32, %arg1: i32, %arg2: memref<1x16x8x72xbf16, #tpu.memory_space<vmem>>, %arg3: memref<12x72x128xbf16, #tpu.memory_space<vmem>>, %arg4: memref<1x128xf32, #tpu.memory_space<vmem>>, %arg5: memref<1x5x8x128xf32, #tpu.memory_space<vmem>>, %arg6: memref<40x128xf32, #tpu.memory_space<vmem>>) attributes {dimension_semantics = [#tpu.dimension_semantics<parallel>, #tpu.dimension_semantics<parallel>], iteration_bounds = array<i64: 2, 1>, scalar_prefetch = 0 : i64, scratch_operands = 1 : i64, tpu.core_type = #tpu.core_type<tc>, window_params = [{transform_indices = @transform_0, window_bounds = array<i64: 1, 16, 8, 72>}, {pipeline_mode = #tpu.pipeline_mode<synchronous>, transform_indices = @transform_1, window_bounds = array<i64: 12, 72, 128>}, {pipeline_mode = #tpu.pipeline_mode<synchronous>, transform_indices = @transform_2, window_bounds = array<i64: 1, 128>}, {transform_indices = @transform_3, window_bounds = array<i64: 1, 5, 8, 128>}]} {
    %c5_i32 = arith.constant 5 : i32
    %0 = arith.muli %arg1, %c5_i32 : i32
    %1 = tpu.assume_multiple %0, 5 : i32
    %c0 = arith.constant 0 : index
    %c0_0 = arith.constant 0 : index
    %2 = vector.load %arg4[%c0, %c0_0] : memref<1x128xf32, #tpu.memory_space<vmem>>, vector<1x128xf32>
    %3 = vector.shape_cast %2 : vector<1x128xf32> to vector<1x128xf32>
    %4 = vector.broadcast %3 : vector<1x128xf32> to vector<40x128xf32>
    %c0_1 = arith.constant 0 : index
    %c0_2 = arith.constant 0 : index
    %5 = vector.load %arg6[%c0_1, %c0_2] : memref<40x128xf32, #tpu.memory_space<vmem>>, vector<40x128xf32>
    tpu.vector_store %arg6[%c0_1, %c0_2], %4 {strides = array<i32>} : memref<40x128xf32, #tpu.memory_space<vmem>>, vector<40x128xf32>,
    %c0_i32 = arith.constant 0 : i32
    %6 = arith.addi %1, %c0_i32 : i32
    %c0_3 = arith.constant 0 : index
    %7 = arith.index_cast %6 : i32 to index
    %c0_4 = arith.constant 0 : index
    %c0_5 = arith.constant 0 : index
    %8 = vector.load %arg2[%c0_3, %7, %c0_4, %c0_5] : memref<1x16x8x72xbf16, #tpu.memory_space<vmem>>, vector<1x5x8x72xbf16>
    %9 = vector.shape_cast %8 : vector<1x5x8x72xbf16> to vector<5x8x72xbf16>
    %10 = vector.shape_cast %9 : vector<5x8x72xbf16> to vector<40x72xbf16>
    %c0_6 = arith.constant 0 : index
    %c0_7 = arith.constant 0 : index
    %11 = vector.load %arg6[%c0_6, %c0_7] : memref<40x128xf32, #tpu.memory_space<vmem>>, vector<40x128xf32>
    %c0_8 = arith.constant 0 : index
    %c0_9 = arith.constant 0 : index
    %c0_10 = arith.constant 0 : index
    %12 = vector.load %arg3[%c0_8, %c0_9, %c0_10] : memref<12x72x128xbf16, #tpu.memory_space<vmem>>, vector<1x72x128xbf16>
    %13 = vector.shape_cast %12 : vector<1x72x128xbf16> to vector<72x128xbf16>
    %cst = arith.constant dense<0.000000e+00> : vector<40x128xf32>
    %14 = tpu.matmul %10, %13, %cst {dimension_numbers = #tpu.dot_dimension_numbers<[1], [0], [0], [1], [0, 0, 1, 1], [], []>} : vector<40x72xbf16>, vector<72x128xbf16>, vector<40x128xf32> -> vector<40x128xf32>
    %15 = arith.addf %11, %14 : vector<40x128xf32>
    %c0_11 = arith.constant 0 : index
    %c0_12 = arith.constant 0 : index
    %16 = vector.load %arg6[%c0_11, %c0_12] : memref<40x128xf32, #tpu.memory_space<vmem>>, vector<40x128xf32>
    tpu.vector_store %arg6[%c0_11, %c0_12], %15 {strides = array<i32>} : memref<40x128xf32, #tpu.memory_space<vmem>>, vector<40x128xf32>,
    %c1_i32 = arith.constant 1 : i32
    %17 = arith.addi %1, %c1_i32 : i32
    %c0_13 = arith.constant 0 : index
    %18 = arith.index_cast %17 : i32 to index
    %c0_14 = arith.constant 0 : index
    %c0_15 = arith.constant 0 : index
    %19 = vector.load %arg2[%c0_13, %18, %c0_14, %c0_15] : memref<1x16x8x72xbf16, #tpu.memory_space<vmem>>, vector<1x5x8x72xbf16>
    %20 = vector.shape_cast %19 : vector<1x5x8x72xbf16> to vector<5x8x72xbf16>
    %21 = vector.shape_cast %20 : vector<5x8x72xbf16> to vector<40x72xbf16>
    %c0_16 = arith.constant 0 : index
    %c0_17 = arith.constant 0 : index
    %22 = vector.load %arg6[%c0_16, %c0_17] : memref<40x128xf32, #tpu.memory_space<vmem>>, vector<40x128xf32>
    %c1 = arith.constant 1 : index
    %c0_18 = arith.constant 0 : index
    %c0_19 = arith.constant 0 : index
    %23 = vector.load %arg3[%c1, %c0_18, %c0_19] : memref<12x72x128xbf16, #tpu.memory_space<vmem>>, vector<1x72x128xbf16>
    %24 = vector.shape_cast %23 : vector<1x72x128xbf16> to vector<72x128xbf16>
    %cst_20 = arith.constant dense<0.000000e+00> : vector<40x128xf32>
    %25 = tpu.matmul %21, %24, %cst_20 {dimension_numbers = #tpu.dot_dimension_numbers<[1], [0], [0], [1], [0, 0, 1, 1], [], []>} : vector<40x72xbf16>, vector<72x128xbf16>, vector<40x128xf32> -> vector<40x128xf32>
    %26 = arith.addf %22, %25 : vector<40x128xf32>
    %c0_21 = arith.constant 0 : index
    %c0_22 = arith.constant 0 : index
    %27 = vector.load %arg6[%c0_21, %c0_22] : memref<40x128xf32, #tpu.memory_space<vmem>>, vector<40x128xf32>
    tpu.vector_store %arg6[%c0_21, %c0_22], %26 {strides = array<i32>} : memref<40x128xf32, #tpu.memory_space<vmem>>, vector<40x128xf32>,
    %c2_i32 = arith.constant 2 : i32
    %28 = arith.addi %1, %c2_i32 : i32
    %c0_23 = arith.constant 0 : index
    %29 = arith.index_cast %28 : i32 to index
    %c0_24 = arith.constant 0 : index
    %c0_25 = arith.constant 0 : index
    %30 = vector.load %arg2[%c0_23, %29, %c0_24, %c0_25] : memref<1x16x8x72xbf16, #tpu.memory_space<vmem>>, vector<1x5x8x72xbf16>
    %31 = vector.shape_cast %30 : vector<1x5x8x72xbf16> to vector<5x8x72xbf16>
    %32 = vector.shape_cast %31 : vector<5x8x72xbf16> to vector<40x72xbf16>
    %c0_26 = arith.constant 0 : index
    %c0_27 = arith.constant 0 : index
    %33 = vector.load %arg6[%c0_26, %c0_27] : memref<40x128xf32, #tpu.memory_space<vmem>>, vector<40x128xf32>
    %c2 = arith.constant 2 : index
    %c0_28 = arith.constant 0 : index
    %c0_29 = arith.constant 0 : index
    %34 = vector.load %arg3[%c2, %c0_28, %c0_29] : memref<12x72x128xbf16, #tpu.memory_space<vmem>>, vector<1x72x128xbf16>
    %35 = vector.shape_cast %34 : vector<1x72x128xbf16> to vector<72x128xbf16>
    %cst_30 = arith.constant dense<0.000000e+00> : vector<40x128xf32>
    %36 = tpu.matmul %32, %35, %cst_30 {dimension_numbers = #tpu.dot_dimension_numbers<[1], [0], [0], [1], [0, 0, 1, 1], [], []>} : vector<40x72xbf16>, vector<72x128xbf16>, vector<40x128xf32> -> vector<40x128xf32>
    %37 = arith.addf %33, %36 : vector<40x128xf32>
    %c0_31 = arith.constant 0 : index
    %c0_32 = arith.constant 0 : index
    %38 = vector.load %arg6[%c0_31, %c0_32] : memref<40x128xf32, #tpu.memory_space<vmem>>, vector<40x128xf32>
    tpu.vector_store %arg6[%c0_31, %c0_32], %37 {strides = array<i32>} : memref<40x128xf32, #tpu.memory_space<vmem>>, vector<40x128xf32>,
    %c3_i32 = arith.constant 3 : i32
    %39 = arith.addi %1, %c3_i32 : i32
    %c0_33 = arith.constant 0 : index
    %40 = arith.index_cast %39 : i32 to index
    %c0_34 = arith.constant 0 : index
    %c0_35 = arith.constant 0 : index
    %41 = vector.load %arg2[%c0_33, %40, %c0_34, %c0_35] : memref<1x16x8x72xbf16, #tpu.memory_space<vmem>>, vector<1x5x8x72xbf16>
    %42 = vector.shape_cast %41 : vector<1x5x8x72xbf16> to vector<5x8x72xbf16>
    %43 = vector.shape_cast %42 : vector<5x8x72xbf16> to vector<40x72xbf16>
    %c0_36 = arith.constant 0 : index
    %c0_37 = arith.constant 0 : index
    %44 = vector.load %arg6[%c0_36, %c0_37] : memref<40x128xf32, #tpu.memory_space<vmem>>, vector<40x128xf32>
    %c3 = arith.constant 3 : index
    %c0_38 = arith.constant 0 : index
    %c0_39 = arith.constant 0 : index
    %45 = vector.load %arg3[%c3, %c0_38, %c0_39] : memref<12x72x128xbf16, #tpu.memory_space<vmem>>, vector<1x72x128xbf16>
    %46 = vector.shape_cast %45 : vector<1x72x128xbf16> to vector<72x128xbf16>
    %cst_40 = arith.constant dense<0.000000e+00> : vector<40x128xf32>
    %47 = tpu.matmul %43, %46, %cst_40 {dimension_numbers = #tpu.dot_dimension_numbers<[1], [0], [0], [1], [0, 0, 1, 1], [], []>} : vector<40x72xbf16>, vector<72x128xbf16>, vector<40x128xf32> -> vector<40x128xf32>
    %48 = arith.addf %44, %47 : vector<40x128xf32>
    %c0_41 = arith.constant 0 : index
    %c0_42 = arith.constant 0 : index
    %49 = vector.load %arg6[%c0_41, %c0_42] : memref<40x128xf32, #tpu.memory_space<vmem>>, vector<40x128xf32>
    tpu.vector_store %arg6[%c0_41, %c0_42], %48 {strides = array<i32>} : memref<40x128xf32, #tpu.memory_space<vmem>>, vector<40x128xf32>,
    %c4_i32 = arith.constant 4 : i32
    %50 = arith.addi %1, %c4_i32 : i32
    %c0_43 = arith.constant 0 : index
    %51 = arith.index_cast %50 : i32 to index
    %c0_44 = arith.constant 0 : index
    %c0_45 = arith.constant 0 : index
    %52 = vector.load %arg2[%c0_43, %51, %c0_44, %c0_45] : memref<1x16x8x72xbf16, #tpu.memory_space<vmem>>, vector<1x5x8x72xbf16>
    %53 = vector.shape_cast %52 : vector<1x5x8x72xbf16> to vector<5x8x72xbf16>
    %54 = vector.shape_cast %53 : vector<5x8x72xbf16> to vector<40x72xbf16>
    %c0_46 = arith.constant 0 : index
    %c0_47 = arith.constant 0 : index
    %55 = vector.load %arg6[%c0_46, %c0_47] : memref<40x128xf32, #tpu.memory_space<vmem>>, vector<40x128xf32>
    %c4 = arith.constant 4 : index
    %c0_48 = arith.constant 0 : index
    %c0_49 = arith.constant 0 : index
    %56 = vector.load %arg3[%c4, %c0_48, %c0_49] : memref<12x72x128xbf16, #tpu.memory_space<vmem>>, vector<1x72x128xbf16>
    %57 = vector.shape_cast %56 : vector<1x72x128xbf16> to vector<72x128xbf16>
    %cst_50 = arith.constant dense<0.000000e+00> : vector<40x128xf32>
    %58 = tpu.matmul %54, %57, %cst_50 {dimension_numbers = #tpu.dot_dimension_numbers<[1], [0], [0], [1], [0, 0, 1, 1], [], []>} : vector<40x72xbf16>, vector<72x128xbf16>, vector<40x128xf32> -> vector<40x128xf32>
    %59 = arith.addf %55, %58 : vector<40x128xf32>
    %c0_51 = arith.constant 0 : index
    %c0_52 = arith.constant 0 : index
    %60 = vector.load %arg6[%c0_51, %c0_52] : memref<40x128xf32, #tpu.memory_space<vmem>>, vector<40x128xf32>
    tpu.vector_store %arg6[%c0_51, %c0_52], %59 {strides = array<i32>} : memref<40x128xf32, #tpu.memory_space<vmem>>, vector<40x128xf32>,
    %c5_i32_53 = arith.constant 5 : i32
    %61 = arith.addi %1, %c5_i32_53 : i32
    %c0_54 = arith.constant 0 : index
    %62 = arith.index_cast %61 : i32 to index
    %c0_55 = arith.constant 0 : index
    %c0_56 = arith.constant 0 : index
    %63 = vector.load %arg2[%c0_54, %62, %c0_55, %c0_56] : memref<1x16x8x72xbf16, #tpu.memory_space<vmem>>, vector<1x5x8x72xbf16>
    %64 = vector.shape_cast %63 : vector<1x5x8x72xbf16> to vector<5x8x72xbf16>
    %65 = vector.shape_cast %64 : vector<5x8x72xbf16> to vector<40x72xbf16>
    %c0_57 = arith.constant 0 : index
    %c0_58 = arith.constant 0 : index
    %66 = vector.load %arg6[%c0_57, %c0_58] : memref<40x128xf32, #tpu.memory_space<vmem>>, vector<40x128xf32>
    %c5 = arith.constant 5 : index
    %c0_59 = arith.constant 0 : index
    %c0_60 = arith.constant 0 : index
    %67 = vector.load %arg3[%c5, %c0_59, %c0_60] : memref<12x72x128xbf16, #tpu.memory_space<vmem>>, vector<1x72x128xbf16>
    %68 = vector.shape_cast %67 : vector<1x72x128xbf16> to vector<72x128xbf16>
    %cst_61 = arith.constant dense<0.000000e+00> : vector<40x128xf32>
    %69 = tpu.matmul %65, %68, %cst_61 {dimension_numbers = #tpu.dot_dimension_numbers<[1], [0], [0], [1], [0, 0, 1, 1], [], []>} : vector<40x72xbf16>, vector<72x128xbf16>, vector<40x128xf32> -> vector<40x128xf32>
    %70 = arith.addf %66, %69 : vector<40x128xf32>
    %c0_62 = arith.constant 0 : index
    %c0_63 = arith.constant 0 : index
    %71 = vector.load %arg6[%c0_62, %c0_63] : memref<40x128xf32, #tpu.memory_space<vmem>>, vector<40x128xf32>
    tpu.vector_store %arg6[%c0_62, %c0_63], %70 {strides = array<i32>} : memref<40x128xf32, #tpu.memory_space<vmem>>, vector<40x128xf32>,
    %c6_i32 = arith.constant 6 : i32
    %72 = arith.addi %1, %c6_i32 : i32
    %c0_64 = arith.constant 0 : index
    %73 = arith.index_cast %72 : i32 to index
    %c0_65 = arith.constant 0 : index
    %c0_66 = arith.constant 0 : index
    %74 = vector.load %arg2[%c0_64, %73, %c0_65, %c0_66] : memref<1x16x8x72xbf16, #tpu.memory_space<vmem>>, vector<1x5x8x72xbf16>
    %75 = vector.shape_cast %74 : vector<1x5x8x72xbf16> to vector<5x8x72xbf16>
    %76 = vector.shape_cast %75 : vector<5x8x72xbf16> to vector<40x72xbf16>
    %c0_67 = arith.constant 0 : index
    %c0_68 = arith.constant 0 : index
    %77 = vector.load %arg6[%c0_67, %c0_68] : memref<40x128xf32, #tpu.memory_space<vmem>>, vector<40x128xf32>
    %c6 = arith.constant 6 : index
    %c0_69 = arith.constant 0 : index
    %c0_70 = arith.constant 0 : index
    %78 = vector.load %arg3[%c6, %c0_69, %c0_70] : memref<12x72x128xbf16, #tpu.memory_space<vmem>>, vector<1x72x128xbf16>
    %79 = vector.shape_cast %78 : vector<1x72x128xbf16> to vector<72x128xbf16>
    %cst_71 = arith.constant dense<0.000000e+00> : vector<40x128xf32>
    %80 = tpu.matmul %76, %79, %cst_71 {dimension_numbers = #tpu.dot_dimension_numbers<[1], [0], [0], [1], [0, 0, 1, 1], [], []>} : vector<40x72xbf16>, vector<72x128xbf16>, vector<40x128xf32> -> vector<40x128xf32>
    %81 = arith.addf %77, %80 : vector<40x128xf32>
    %c0_72 = arith.constant 0 : index
    %c0_73 = arith.constant 0 : index
    %82 = vector.load %arg6[%c0_72, %c0_73] : memref<40x128xf32, #tpu.memory_space<vmem>>, vector<40x128xf32>
    tpu.vector_store %arg6[%c0_72, %c0_73], %81 {strides = array<i32>} : memref<40x128xf32, #tpu.memory_space<vmem>>, vector<40x128xf32>,
    %c7_i32 = arith.constant 7 : i32
    %83 = arith.addi %1, %c7_i32 : i32
    %c0_74 = arith.constant 0 : index
    %84 = arith.index_cast %83 : i32 to index
    %c0_75 = arith.constant 0 : index
    %c0_76 = arith.constant 0 : index
    %85 = vector.load %arg2[%c0_74, %84, %c0_75, %c0_76] : memref<1x16x8x72xbf16, #tpu.memory_space<vmem>>, vector<1x5x8x72xbf16>
    %86 = vector.shape_cast %85 : vector<1x5x8x72xbf16> to vector<5x8x72xbf16>
    %87 = vector.shape_cast %86 : vector<5x8x72xbf16> to vector<40x72xbf16>
    %c0_77 = arith.constant 0 : index
    %c0_78 = arith.constant 0 : index
    %88 = vector.load %arg6[%c0_77, %c0_78] : memref<40x128xf32, #tpu.memory_space<vmem>>, vector<40x128xf32>
    %c7 = arith.constant 7 : index
    %c0_79 = arith.constant 0 : index
    %c0_80 = arith.constant 0 : index
    %89 = vector.load %arg3[%c7, %c0_79, %c0_80] : memref<12x72x128xbf16, #tpu.memory_space<vmem>>, vector<1x72x128xbf16>
    %90 = vector.shape_cast %89 : vector<1x72x128xbf16> to vector<72x128xbf16>
    %cst_81 = arith.constant dense<0.000000e+00> : vector<40x128xf32>
    %91 = tpu.matmul %87, %90, %cst_81 {dimension_numbers = #tpu.dot_dimension_numbers<[1], [0], [0], [1], [0, 0, 1, 1], [], []>} : vector<40x72xbf16>, vector<72x128xbf16>, vector<40x128xf32> -> vector<40x128xf32>
    %92 = arith.addf %88, %91 : vector<40x128xf32>
    %c0_82 = arith.constant 0 : index
    %c0_83 = arith.constant 0 : index
    %93 = vector.load %arg6[%c0_82, %c0_83] : memref<40x128xf32, #tpu.memory_space<vmem>>, vector<40x128xf32>
    tpu.vector_store %arg6[%c0_82, %c0_83], %92 {strides = array<i32>} : memref<40x128xf32, #tpu.memory_space<vmem>>, vector<40x128xf32>,
    %c8_i32 = arith.constant 8 : i32
    %94 = arith.addi %1, %c8_i32 : i32
    %c0_84 = arith.constant 0 : index
    %95 = arith.index_cast %94 : i32 to index
    %c0_85 = arith.constant 0 : index
    %c0_86 = arith.constant 0 : index
    %96 = vector.load %arg2[%c0_84, %95, %c0_85, %c0_86] : memref<1x16x8x72xbf16, #tpu.memory_space<vmem>>, vector<1x5x8x72xbf16>
    %97 = vector.shape_cast %96 : vector<1x5x8x72xbf16> to vector<5x8x72xbf16>
    %98 = vector.shape_cast %97 : vector<5x8x72xbf16> to vector<40x72xbf16>
    %c0_87 = arith.constant 0 : index
    %c0_88 = arith.constant 0 : index
    %99 = vector.load %arg6[%c0_87, %c0_88] : memref<40x128xf32, #tpu.memory_space<vmem>>, vector<40x128xf32>
    %c8 = arith.constant 8 : index
    %c0_89 = arith.constant 0 : index
    %c0_90 = arith.constant 0 : index
    %100 = vector.load %arg3[%c8, %c0_89, %c0_90] : memref<12x72x128xbf16, #tpu.memory_space<vmem>>, vector<1x72x128xbf16>
    %101 = vector.shape_cast %100 : vector<1x72x128xbf16> to vector<72x128xbf16>
    %cst_91 = arith.constant dense<0.000000e+00> : vector<40x128xf32>
    %102 = tpu.matmul %98, %101, %cst_91 {dimension_numbers = #tpu.dot_dimension_numbers<[1], [0], [0], [1], [0, 0, 1, 1], [], []>} : vector<40x72xbf16>, vector<72x128xbf16>, vector<40x128xf32> -> vector<40x128xf32>
    %103 = arith.addf %99, %102 : vector<40x128xf32>
    %c0_92 = arith.constant 0 : index
    %c0_93 = arith.constant 0 : index
    %104 = vector.load %arg6[%c0_92, %c0_93] : memref<40x128xf32, #tpu.memory_space<vmem>>, vector<40x128xf32>
    tpu.vector_store %arg6[%c0_92, %c0_93], %103 {strides = array<i32>} : memref<40x128xf32, #tpu.memory_space<vmem>>, vector<40x128xf32>,
    %c9_i32 = arith.constant 9 : i32
    %105 = arith.addi %1, %c9_i32 : i32
    %c0_94 = arith.constant 0 : index
    %106 = arith.index_cast %105 : i32 to index
    %c0_95 = arith.constant 0 : index
    %c0_96 = arith.constant 0 : index
    %107 = vector.load %arg2[%c0_94, %106, %c0_95, %c0_96] : memref<1x16x8x72xbf16, #tpu.memory_space<vmem>>, vector<1x5x8x72xbf16>
    %108 = vector.shape_cast %107 : vector<1x5x8x72xbf16> to vector<5x8x72xbf16>
    %109 = vector.shape_cast %108 : vector<5x8x72xbf16> to vector<40x72xbf16>
    %c0_97 = arith.constant 0 : index
    %c0_98 = arith.constant 0 : index
    %110 = vector.load %arg6[%c0_97, %c0_98] : memref<40x128xf32, #tpu.memory_space<vmem>>, vector<40x128xf32>
    %c9 = arith.constant 9 : index
    %c0_99 = arith.constant 0 : index
    %c0_100 = arith.constant 0 : index
    %111 = vector.load %arg3[%c9, %c0_99, %c0_100] : memref<12x72x128xbf16, #tpu.memory_space<vmem>>, vector<1x72x128xbf16>
    %112 = vector.shape_cast %111 : vector<1x72x128xbf16> to vector<72x128xbf16>
    %cst_101 = arith.constant dense<0.000000e+00> : vector<40x128xf32>
    %113 = tpu.matmul %109, %112, %cst_101 {dimension_numbers = #tpu.dot_dimension_numbers<[1], [0], [0], [1], [0, 0, 1, 1], [], []>} : vector<40x72xbf16>, vector<72x128xbf16>, vector<40x128xf32> -> vector<40x128xf32>
    %114 = arith.addf %110, %113 : vector<40x128xf32>
    %c0_102 = arith.constant 0 : index
    %c0_103 = arith.constant 0 : index
    %115 = vector.load %arg6[%c0_102, %c0_103] : memref<40x128xf32, #tpu.memory_space<vmem>>, vector<40x128xf32>
    tpu.vector_store %arg6[%c0_102, %c0_103], %114 {strides = array<i32>} : memref<40x128xf32, #tpu.memory_space<vmem>>, vector<40x128xf32>,
    %c10_i32 = arith.constant 10 : i32
    %116 = arith.addi %1, %c10_i32 : i32
    %c0_104 = arith.constant 0 : index
    %117 = arith.index_cast %116 : i32 to index
    %c0_105 = arith.constant 0 : index
    %c0_106 = arith.constant 0 : index
    %118 = vector.load %arg2[%c0_104, %117, %c0_105, %c0_106] : memref<1x16x8x72xbf16, #tpu.memory_space<vmem>>, vector<1x5x8x72xbf16>
    %119 = vector.shape_cast %118 : vector<1x5x8x72xbf16> to vector<5x8x72xbf16>
    %120 = vector.shape_cast %119 : vector<5x8x72xbf16> to vector<40x72xbf16>
    %c0_107 = arith.constant 0 : index
    %c0_108 = arith.constant 0 : index
    %121 = vector.load %arg6[%c0_107, %c0_108] : memref<40x128xf32, #tpu.memory_space<vmem>>, vector<40x128xf32>
    %c10 = arith.constant 10 : index
    %c0_109 = arith.constant 0 : index
    %c0_110 = arith.constant 0 : index
    %122 = vector.load %arg3[%c10, %c0_109, %c0_110] : memref<12x72x128xbf16, #tpu.memory_space<vmem>>, vector<1x72x128xbf16>
    %123 = vector.shape_cast %122 : vector<1x72x128xbf16> to vector<72x128xbf16>
    %cst_111 = arith.constant dense<0.000000e+00> : vector<40x128xf32>
    %124 = tpu.matmul %120, %123, %cst_111 {dimension_numbers = #tpu.dot_dimension_numbers<[1], [0], [0], [1], [0, 0, 1, 1], [], []>} : vector<40x72xbf16>, vector<72x128xbf16>, vector<40x128xf32> -> vector<40x128xf32>
    %125 = arith.addf %121, %124 : vector<40x128xf32>
    %c0_112 = arith.constant 0 : index
    %c0_113 = arith.constant 0 : index
    %126 = vector.load %arg6[%c0_112, %c0_113] : memref<40x128xf32, #tpu.memory_space<vmem>>, vector<40x128xf32>
    tpu.vector_store %arg6[%c0_112, %c0_113], %125 {strides = array<i32>} : memref<40x128xf32, #tpu.memory_space<vmem>>, vector<40x128xf32>,
    %c11_i32 = arith.constant 11 : i32
    %127 = arith.addi %1, %c11_i32 : i32
    %c0_114 = arith.constant 0 : index
    %128 = arith.index_cast %127 : i32 to index
    %c0_115 = arith.constant 0 : index
    %c0_116 = arith.constant 0 : index
    %129 = vector.load %arg2[%c0_114, %128, %c0_115, %c0_116] : memref<1x16x8x72xbf16, #tpu.memory_space<vmem>>, vector<1x5x8x72xbf16>
    %130 = vector.shape_cast %129 : vector<1x5x8x72xbf16> to vector<5x8x72xbf16>
    %131 = vector.shape_cast %130 : vector<5x8x72xbf16> to vector<40x72xbf16>
    %c0_117 = arith.constant 0 : index
    %c0_118 = arith.constant 0 : index
    %132 = vector.load %arg6[%c0_117, %c0_118] : memref<40x128xf32, #tpu.memory_space<vmem>>, vector<40x128xf32>
    %c11 = arith.constant 11 : index
    %c0_119 = arith.constant 0 : index
    %c0_120 = arith.constant 0 : index
    %133 = vector.load %arg3[%c11, %c0_119, %c0_120] : memref<12x72x128xbf16, #tpu.memory_space<vmem>>, vector<1x72x128xbf16>
    %134 = vector.shape_cast %133 : vector<1x72x128xbf16> to vector<72x128xbf16>
    %cst_121 = arith.constant dense<0.000000e+00> : vector<40x128xf32>
    %135 = tpu.matmul %131, %134, %cst_121 {dimension_numbers = #tpu.dot_dimension_numbers<[1], [0], [0], [1], [0, 0, 1, 1], [], []>} : vector<40x72xbf16>, vector<72x128xbf16>, vector<40x128xf32> -> vector<40x128xf32>
    %136 = arith.addf %132, %135 : vector<40x128xf32>
    %c0_122 = arith.constant 0 : index
    %c0_123 = arith.constant 0 : index
    %137 = vector.load %arg6[%c0_122, %c0_123] : memref<40x128xf32, #tpu.memory_space<vmem>>, vector<40x128xf32>
    tpu.vector_store %arg6[%c0_122, %c0_123], %136 {strides = array<i32>} : memref<40x128xf32, #tpu.memory_space<vmem>>, vector<40x128xf32>,
    %c0_124 = arith.constant 0 : index
    %c0_125 = arith.constant 0 : index
    %138 = vector.load %arg6[%c0_124, %c0_125] : memref<40x128xf32, #tpu.memory_space<vmem>>, vector<40x128xf32>
    %139 = vector.shape_cast %138 : vector<40x128xf32> to vector<1x5x8x128xf32>
    %c0_126 = arith.constant 0 : index
    %c0_127 = arith.constant 0 : index
    %c0_128 = arith.constant 0 : index
    %c0_129 = arith.constant 0 : index
    %140 = vector.load %arg5[%c0_126, %c0_127, %c0_128, %c0_129] : memref<1x5x8x128xf32, #tpu.memory_space<vmem>>, vector<1x5x8x128xf32>
    tpu.vector_store %arg5[%c0_126, %c0_127, %c0_128, %c0_129], %139 {strides = array<i32>} : memref<1x5x8x128xf32, #tpu.memory_space<vmem>>, vector<1x5x8x128xf32>,
    return
  }
  func.func @transform_0(%arg0: i32, %arg1: i32) -> (i32, i32, i32, i32) {
    %c0_i32 = arith.constant 0 : i32
    %c0_i32_0 = arith.constant 0 : i32
    %c0_i32_1 = arith.constant 0 : i32
    %c0_i32_2 = arith.constant 0 : i32
    return %arg0, %c0_i32, %c0_i32_0, %c0_i32_1 : i32, i32, i32, i32
  }
  func.func @transform_1(%arg0: i32, %arg1: i32) -> (i32, i32, i32) {
    %c0_i32 = arith.constant 0 : i32
    %c0_i32_0 = arith.constant 0 : i32
    %c0_i32_1 = arith.constant 0 : i32
    %c0_i32_2 = arith.constant 0 : i32
    return %c0_i32, %c0_i32_0, %c0_i32_1 : i32, i32, i32
  }
  func.func @transform_2(%arg0: i32, %arg1: i32) -> (i32, i32) {
    %c0_i32 = arith.constant 0 : i32
    %c0_i32_0 = arith.constant 0 : i32
    %c0_i32_1 = arith.constant 0 : i32
    return %c0_i32, %c0_i32_0 : i32, i32
  }
  func.func @transform_3(%arg0: i32, %arg1: i32) -> (i32, i32, i32, i32) {
    %c0_i32 = arith.constant 0 : i32
    %c0_i32_0 = arith.constant 0 : i32
    %c0_i32_1 = arith.constant 0 : i32
    return %arg0, %arg1, %c0_i32, %c0_i32_0 : i32, i32, i32, i32
  }
}

</mosaic_0001>

<llo_original>
// kernel: input_gate_conv.1
$region0: #{input_gate_conv.1}
  #allocation0 [shape = 'u32[]', space=smem, size = 0x4, offset = 0x4, fixed_abs, tag = 'smem constant byte address 0x4 - core index']
  #allocation1 [shape = 'u32[144,128]{1,0:T(1,128)}', space=vmem, size = 0x12000, scoped, tag = 'internal scratch']
  #allocation2 [shape = 'f32[40,128]{1,0:T(8,128)}', space=vmem, size = 0x5000, scoped, tag = 'scratch operand']
  %s0 = inlined_call_operand.vmem [shape: bf16[2,16,8,72], index: 0, kind: input, shape index: {}]
  %s1 = inlined_call_operand.vmem [shape: bf16[12,72,128], index: 1, kind: input, shape index: {}]
  %s2 = inlined_call_operand.vmem [shape: f32[1,128], index: 2, kind: input, shape index: {}]
  %s3 = inlined_call_operand.vmem [shape: f32[2,5,8,128], index: 3, kind: output, shape index: {}]
  %s4 = sld [smem:[#allocation0]]
  $region45: #{input_gate_conv.1} parent=0
    _
  %s6 = ssub.s32 1, %s4
  %s7 = scalar_select 0, %s6, %s4
  loop: start=0, step=1, limit=4
  $region2: #{input_gate_conv.1} parent=0 // loop_pre_header
    _
  $region3: #{input_gate_conv.1} parent=0 // loop_header
    %s9 = sphi 0, %s13
    %p10 = scmp.ge.s32.totalorder %s9, 4
    %s16 = sphi 0, %s28
    %s17 = sphi 0, %s24
    %s18 = sphi 0, %s16
    %s19 = sphi 0, %s17
    %s20 = sphi 0, %s18
    %s21 = sphi 0, %s19
    %s31 = sphi 0, %s33
    %s34 = sphi 0, %s31
    %s35 = sphi 0, %s34
    %s51 = sphi 0, %s35
    %s55 = sphi 0, %s55
    %s57 = sphi 0, %s55
    %s58 = sphi 0, %s57
    %s72 = sphi 0, %s58
    %s76 = sphi 0, %s76
    %s78 = sphi 0, %s76
    %s79 = sphi 0, %s78
    %s93 = sphi 0, %s79
    %s101 = sphi 0, %s103
    %s104 = sphi 0, %s101
    %s105 = sphi 0, %s104
    %s121 = sphi 0, %s105
  $region4: #{input_gate_conv.1} parent=0 // loop_header_branch
    %12 = sbr.rel (%p10) target = $region8
  $region5: #{input_gate_conv.1} parent=0 // loop_body
    %s14 = ssub.s32 %s9, 1
    %s15 = ssub.s32 %s9, 2
    %s22 = sadd.s32 1, %s17
    %p23 = scmp.ge.s32.totalorder %s22, 1
    %s24 = scalar_select %p23, 0, %s22
    %s25 = sadd.s32 1, %s16
    %s26 = scalar_select %p23, %s25, %s16
    %p27 = scmp.ge.s32.totalorder %s26, 2
    %s28 = scalar_select %p27, 0, %s26
    %s29 = ssub.s32 %s16, %s28
    %p30 = scmp.eq.s32.totalorder %s29, 0
    %s32 = sadd.s32 %s31, 1
    %s33 = scalar_select %p30, %s31, %s32
    %p36 = pneg %p30
    %p37 = scmp.eq.s32.totalorder %s9, 1
    %p38 = por %p36, %p37
    %p39 = scmp.ne.s32.totalorder %s31, %s34
    %p40 = scmp.eq.s32.totalorder %s9, 0
    %p41 = por %p39, %p40
    %p42 = scmp.ne.s32.totalorder %s31, %s34
    %p43 = scmp.eq.s32.totalorder %s14, 1
    %p44 = por %p42, %p43
    %p45 = scmp.ne.s32.totalorder %s34, %s35
    %p46 = scmp.eq.s32.totalorder %s14, 0
    %p47 = por %p45, %p46
    %p48 = scmp.ne.s32.totalorder %s34, %s35
    %p49 = scmp.eq.s32.totalorder %s15, 1
    %p50 = por %p48, %p49
    %p52 = scmp.ne.s32.totalorder %s35, %s51
    %p53 = scmp.eq.s32.totalorder %s15, 0
    %p54 = por %p52, %p53
    %s56 = sadd.s32 %s55, 1
    %p59 = scmp.eq.s32.totalorder %s9, 1
    %p60 = scmp.ne.s32.totalorder %s55, %s57
    %p61 = scmp.eq.s32.totalorder %s9, 0
    %p62 = por %p60, %p61
    %p63 = scmp.ne.s32.totalorder %s55, %s57
    %p64 = scmp.eq.s32.totalorder %s14, 1
    %p65 = por %p63, %p64
    %p66 = scmp.ne.s32.totalorder %s57, %s58
    %p67 = scmp.eq.s32.totalorder %s14, 0
    %p68 = por %p66, %p67
    %p69 = scmp.ne.s32.totalorder %s57, %s58
    %p70 = scmp.eq.s32.totalorder %s15, 1
    %p71 = por %p69, %p70
    %p73 = scmp.ne.s32.totalorder %s58, %s72
    %p74 = scmp.eq.s32.totalorder %s15, 0
    %p75 = por %p73, %p74
    %s77 = sadd.s32 %s76, 1
    %p80 = scmp.eq.s32.totalorder %s9, 1
    %p81 = scmp.ne.s32.totalorder %s76, %s78
    %p82 = scmp.eq.s32.totalorder %s9, 0
    %p83 = por %p81, %p82
    %p84 = scmp.ne.s32.totalorder %s76, %s78
    %p85 = scmp.eq.s32.totalorder %s14, 1
    %p86 = por %p84, %p85
    %p87 = scmp.ne.s32.totalorder %s78, %s79
    %p88 = scmp.eq.s32.totalorder %s14, 0
    %p89 = por %p87, %p88
    %p90 = scmp.ne.s32.totalorder %s78, %s79
    %p91 = scmp.eq.s32.totalorder %s15, 1
    %p92 = por %p90, %p91
    %p94 = scmp.ne.s32.totalorder %s79, %s93
    %p95 = scmp.eq.s32.totalorder %s15, 0
    %p96 = por %p94, %p95
    %s97 = ssub.s32 %s16, %s28
    %s98 = ssub.s32 %s17, %s24
    %s99 = sor.u32 %s97, %s98
    %p100 = scmp.eq.s32.totalorder %s99, 0
    %s102 = sadd.s32 %s101, 1
    %s103 = scalar_select %p100, %s101, %s102
    %p106 = pneg %p100
    %p107 = scmp.eq.s32.totalorder %s9, 1
    %p108 = por %p106, %p107
    %p109 = scmp.ne.s32.totalorder %s101, %s104
    %p110 = scmp.eq.s32.totalorder %s9, 0
    %p111 = por %p109, %p110
    %p112 = scmp.ne.s32.totalorder %s101, %s104
    %p113 = scmp.eq.s32.totalorder %s14, 1
    %p114 = por %p112, %p113
    %p115 = scmp.ne.s32.totalorder %s104, %s105
    %p116 = scmp.eq.s32.totalorder %s14, 0
    %p117 = por %p115, %p116
    %p118 = scmp.ne.s32.totalorder %s104, %s105
    %p119 = scmp.eq.s32.totalorder %s15, 1
    %p120 = por %p118, %p119
    %p122 = scmp.ne.s32.totalorder %s105, %s121
    %p123 = scmp.eq.s32.totalorder %s15, 0
    %p124 = por %p122, %p123
    %p125 = scmp.le.s32.totalorder 1, %s9
    %p126 = scmp.lt.s32.totalorder %s9, 3
    %p127 = pnand %p125, %p126
    %p128 = pneg %p127
    // Predicated region
    $region9: #{input_gate_conv.1} parent=5 // pred_check
      _
    $region10: #{input_gate_conv.1} parent=5 // pred_check_branch
      %130 = sbr.rel (%p127) target = $region12
    $region11: #{input_gate_conv.1} parent=5 // pred_region
      %s131 = ssub.s32 %s9, 1
      // Predicated region
      $region13: #{input_gate_conv.1} parent=11 // pred_check
        %p132 = pneg %p68
      $region14: #{input_gate_conv.1} parent=11 // pred_check_branch
        %134 = sbr.rel (%p132) target = $region16
      $region15: #{input_gate_conv.1} parent=11 // pred_region
        _
      $region16: #{input_gate_conv.1} parent=11 // pred_fallthru
        _
      // Predicated region
      $region17: #{input_gate_conv.1} parent=11 // pred_check
        %p135 = pneg %p89
      $region18: #{input_gate_conv.1} parent=11 // pred_check_branch
        %137 = sbr.rel (%p135) target = $region20
      $region19: #{input_gate_conv.1} parent=11 // pred_region
        _
      $region20: #{input_gate_conv.1} parent=11 // pred_fallthru
        _
    $region12: #{input_gate_conv.1} parent=5 // pred_fallthru
      _
    %p138 = scmp.lt.s32.totalorder %s9, 2
    // Predicated region
    $region21: #{input_gate_conv.1} parent=5 // pred_check
      %p139 = pneg %p138
    $region22: #{input_gate_conv.1} parent=5 // pred_check_branch
      %141 = sbr.rel (%p139) target = $region24
    $region23: #{input_gate_conv.1} parent=5 // pred_region
      // Predicated region
      $region25: #{input_gate_conv.1} parent=23 // pred_check
        %p142 = pneg %p41
      $region26: #{input_gate_conv.1} parent=23 // pred_check_branch
        %144 = sbr.rel (%p142) target = $region28
      $region27: #{input_gate_conv.1} parent=23 // pred_region
        %p145 = scmp.lt.s32.totalorder %s16, 1
        %s146 = scalar_select %p145, %s16, 1
        %s147 = smul.addr %s146, 16
        %s148 = smul.addr %s147, 4
        %s149 = scalar_lea.vmem %s0, %s148
      $region28: #{input_gate_conv.1} parent=23 // pred_fallthru
        _
    $region24: #{input_gate_conv.1} parent=5 // pred_fallthru
      _
    %p150 = scmp.le.s32.totalorder 1, %s9
    %p151 = scmp.lt.s32.totalorder %s9, 3
    %p152 = pnand %p150, %p151
    %p153 = pneg %p152
    // Predicated region
    $region29: #{input_gate_conv.1} parent=5 // pred_check
      _
    $region30: #{input_gate_conv.1} parent=5 // pred_check_branch
      %155 = sbr.rel (%p152) target = $region32
    $region31: #{input_gate_conv.1} parent=5 // pred_region
      %s156 = ssub.s32 %s9, 1
      %p157 = scmp.lt.s32.totalorder %s18, 1
      %s158 = scalar_select %p157, %s18, 1
      %s159 = smul.addr %s158, 16
      %s160 = smul.addr %s159, 4
      %s161 = scalar_lea.vmem %s0, %s160
      %p162 = pneg %p47
      %p163 = pneg %p44
      %p164 = pneg %p68
      %p165 = pneg %p65
      %p166 = pneg %p89
      %p167 = pneg %p86
      %p168 = pneg %p117
      %p169 = pneg %p114
      %s170 = smul.u32 5, %s19
      %p171 = scmp.lt.s32.totalorder %s18, 1
      %s172 = scalar_select %p171, %s18, 1
      %p173 = scmp.lt.s32.totalorder %s170, 4
      %s174 = scalar_select %p173, %s170, 4
      %s175 = smul.addr %s172, 5
      %s176 = sadd.s32 %s174, %s175
      %s177 = smul.addr %s176, 8
      %s178 = scalar_lea.vmem %s3, %s177
      %p179 = scmp.lt.s32.totalorder %s18, 1
      %s180 = scalar_select %p179, %s18, 1
      %s181 = smul.addr %s180, 16
      %s182 = smul.addr %s181, 4
      %s183 = scalar_lea.vmem %s0, %s182
      %s184 = smul.u32 5, %s19
      %p185 = scmp.lt.s32.totalorder %s18, 1
      %s186 = scalar_select %p185, %s18, 1
      %p187 = scmp.lt.s32.totalorder %s184, 4
      %s188 = scalar_select %p187, %s184, 4
      %s189 = smul.addr %s186, 5
      %s190 = sadd.s32 %s188, %s189
      %s191 = smul.addr %s190, 8
      %s192 = scalar_lea.vmem %s3, %s191
      %s193 = smul.u32 5, %s19
      %s195 = smul.u32 %s19, 5
      %v196 = vld [vmem:[%s2] sm:$0x1]
      %v198 = vlaneseq
      %v199 = vshrl.u32 %v198, 7
      %v200 = vsub.s32 0, %v199
      %v201 = vrot.slane %v196, %v200
      %203 = vst [vmem:[#allocation2] sm:$0xff] %v201
      %204 = vst [vmem:[#allocation2 + $0x8] sm:$0xff] %v201
      %205 = vst [vmem:[#allocation2 + $0x10] sm:$0xff] %v201
      %206 = vst [vmem:[#allocation2 + $0x18] sm:$0xff] %v201
      %207 = vst [vmem:[#allocation2 + $0x20] sm:$0xff] %v201
      %s208 = smul.addr %s195, 4
      %s209 = scalar_lea.vmem %s183, %s208
      %v210 = vld [vmem:[%s209] sm:$0xf]
      %v211 = vld [vmem:[%s209 + $0x4] sm:$0xf]
      %v212 = vld [vmem:[%s209 + $0x8] sm:$0xf]
      %v213 = vld [vmem:[%s209 + $0xc] sm:$0xf]
      %v214 = vld [vmem:[%s209 + $0x10] sm:$0xf]
      %v215 = vld [vmem:[#allocation2] sm:$0xff]
      %v216 = vld [vmem:[#allocation2 + $0x8] sm:$0xff]
      %v217 = vld [vmem:[#allocation2 + $0x10] sm:$0xff]
      %v218 = vld [vmem:[#allocation2 + $0x18] sm:$0xff]
      %v219 = vld [vmem:[#allocation2 + $0x20] sm:$0xff]
      %v220 = vld [vmem:[%s1] sm:$0xf]
      %v221 = vld [vmem:[%s1 + $0x4] sm:$0xf]
      %v222 = vld [vmem:[%s1 + $0x8] sm:$0xf]
      %v223 = vld [vmem:[%s1 + $0xc] sm:$0xf]
      %v224 = vld [vmem:[%s1 + $0x10] sm:$0xf]
      %v225 = vld [vmem:[%s1 + $0x14] sm:$0xf]
      %v226 = vld [vmem:[%s1 + $0x18] sm:$0xf]
      %v227 = vld [vmem:[%s1 + $0x1c] sm:$0xf]
      %v228 = vld [vmem:[%s1 + $0x20] sm:$0xf]
      %v234 = vunpack.c.l.b16 %v210
      %v235 = vunpack.c.l.b16 %v211
      %v236 = vunpack.c.l.b16 %v212
      %v237 = vunpack.c.l.b16 %v213
      %v238 = vunpack.c.l.b16 %v214
      %v239 = vpack.c.b16 %v235, %v234
      %v240 = vpack.c.b16 %v237, %v236
      %v241 = vpack.c.b16 %v238, %v238
      %v251 = vunpack.c.l.b16 %v220
      %v252 = vunpack.c.l.b16 %v221
      %v253 = vunpack.c.l.b16 %v222
      %v254 = vunpack.c.l.b16 %v223
      %v255 = vunpack.c.l.b16 %v224
      %v256 = vunpack.c.l.b16 %v225
      %v257 = vunpack.c.l.b16 %v226
      %v258 = vunpack.c.l.b16 %v227
      %v259 = vunpack.c.l.b16 %v228
      %v260 = vpack.c.b16 %v252, %v251
      %v261 = vpack.c.b16 %v254, %v253
      %v262 = vpack.c.b16 %v256, %v255
      %v263 = vpack.c.b16 %v258, %v257
      %v264 = vpack.c.b16 %v259, %v259
      %vm269 = vcmask 588800
      %v271 = vsel %vm269, %v239, 0
      %v274 = vsel %vm269, %v240, 0
      %v277 = vsel %vm269, %v241, 0
      %vm279 = vcmask 1043456
      %v281 = vsel %vm279, %v264, 0
      %283 = vmatprep.subr.bf16.mxu0 0
      %284 = vmatpush1.bf16.msra.mxu0 %v260
      %285 = vmatprep.subr.bf16.mxu0 0
      %286 = vmatpush1.bf16.msra.mxu0 %v261
      %287 = vmatprep.subr.bf16.mxu0 0
      %288 = vmatpush1.bf16.msra.mxu0 %v262
      %289 = vmatprep.subr.bf16.mxu0 0
      %290 = vmatpush1.bf16.msra.mxu0 %v263
      %291 = vmatprep.subr.bf16.mxu0 0
      %292 = vmatpush1.bf16.msra.mxu0 %v281
      %293 = vmatprep.subr.bf16.mxu0 0
      %294 = vmatpush1.bf16.msra.mxu0 0
      %295 = vmatprep.subr.bf16.mxu0 0
      %296 = vmatpush1.bf16.msra.mxu0 0
      %297 = vmatprep.subr.bf16.mxu0 0
      %298 = vmatpush1.bf16.msra.mxu0 0
      %299 = vmatprep.subr.bf16.mxu0 0
      %300 = vmatpush1.bf16.msra.mxu0 0
      %301 = vmatprep.subr.bf16.mxu0 0
      %302 = vmatpush1.bf16.msra.mxu0 0
      %303 = vmatprep.subr.bf16.mxu0 0
      %304 = vmatpush1.bf16.msra.mxu0 0
      %305 = vmatprep.subr.bf16.mxu0 0
      %306 = vmatpush1.bf16.msra.mxu0 0
      %307 = vmatprep.subr.bf16.mxu0 0
      %308 = vmatpush1.bf16.msra.mxu0 0
      %309 = vmatprep.subr.bf16.mxu0 0
      %310 = vmatpush1.bf16.msra.mxu0 0
      %311 = vmatprep.subr.bf16.mxu0 0
      %312 = vmatpush1.bf16.msra.mxu0 0
      %313 = vmatprep.subr.bf16.mxu0 0
      %314 = vmatpush1.bf16.msra.mxu0 0
      %315 = vmatprep.mubr.bf16.mxu0 0
      %316 = vmatmul.mubr.bf16.gmra.mrb[0].mxu0 %v271
      %v317 = vpop.f32.mrb[0].mxu0
      %v318 = vadd.f32 0.0, %v317
      %v319 = vpop.f32.mrb[0].mxu0
      %v320 = vpop.f32.mrb[0].mxu0
      %v321 = vadd.f32 0.0, %v320
      %v322 = vpop.f32.mrb[0].mxu0
      %323 = vmatprep.mubr.bf16.mxu0 0
      %324 = vmatmul.mubr.bf16.gmra.mrb[0].mxu0 %v274
      %v325 = vpop.f32.mrb[0].mxu0
      %v326 = vadd.f32 0.0, %v325
      %v327 = vpop.f32.mrb[0].mxu0
      %v328 = vpop.f32.mrb[0].mxu0
      %v329 = vadd.f32 0.0, %v328
      %v330 = vpop.f32.mrb[0].mxu0
      %331 = vmatprep.mubr.bf16.mxu0 0
      %332 = vmatmul.mubr.bf16.gmra.mrb[0].mxu0 %v277
      %v333 = vpop.f32.mrb[0].mxu0
      %v334 = vadd.f32 0.0, %v333
      %v335 = vpop.f32.mrb[0].mxu0
      %v336 = vpop.f32.mrb[0].mxu0
      %v337 = vpop.f32.mrb[0].mxu0
      %338 = vdwg.mxu0
      %v339 = vadd.f32 %v215, %v318
      %v340 = vadd.f32 %v216, %v321
      %v341 = vadd.f32 %v217, %v326
      %v342 = vadd.f32 %v218, %v329
      %v343 = vadd.f32 %v219, %v334
      %344 = vst [vmem:[#allocation2] sm:$0xff] %v339
      %345 = vst [vmem:[#allocation2 + $0x8] sm:$0xff] %v340
      %346 = vst [vmem:[#allocation2 + $0x10] sm:$0xff] %v341
      %347 = vst [vmem:[#allocation2 + $0x18] sm:$0xff] %v342
      %348 = vst [vmem:[#allocation2 + $0x20] sm:$0xff] %v343
      %s349 = sadd.s32 %s195, 1
      %s350 = smul.addr %s349, 4
      %s351 = scalar_lea.vmem %s183, %s350
      %v352 = vld [vmem:[%s351] sm:$0xf]
      %v353 = vld [vmem:[%s351 + $0x4] sm:$0xf]
      %v354 = vld [vmem:[%s351 + $0x8] sm:$0xf]
      %v355 = vld [vmem:[%s351 + $0xc] sm:$0xf]
      %v356 = vld [vmem:[%s351 + $0x10] sm:$0xf]
      %v357 = vld [vmem:[#allocation2] sm:$0xff]
      %v358 = vld [vmem:[#allocation2 + $0x8] sm:$0xff]
      %v359 = vld [vmem:[#allocation2 + $0x10] sm:$0xff]
      %v360 = vld [vmem:[#allocation2 + $0x18] sm:$0xff]
      %v361 = vld [vmem:[#allocation2 + $0x20] sm:$0xff]
      %s362 = scalar_lea.vmem %s1, 36
      %v363 = vld [vmem:[%s362] sm:$0xf]
      %v364 = vld [vmem:[%s362 + $0x4] sm:$0xf]
      %v365 = vld [vmem:[%s362 + $0x8] sm:$0xf]
      %v366 = vld [vmem:[%s362 + $0xc] sm:$0xf]
      %v367 = vld [vmem:[%s362 + $0x10] sm:$0xf]
      %v368 = vld [vmem:[%s362 + $0x14] sm:$0xf]
      %v369 = vld [vmem:[%s362 + $0x18] sm:$0xf]
      %v370 = vld [vmem:[%s362 + $0x1c] sm:$0xf]
      %v371 = vld [vmem:[%s362 + $0x20] sm:$0xf]
      %v377 = vunpack.c.l.b16 %v352
      %v378 = vunpack.c.l.b16 %v353
      %v379 = vunpack.c.l.b16 %v354
      %v380 = vunpack.c.l.b16 %v355
      %v381 = vunpack.c.l.b16 %v356
      %v382 = vpack.c.b16 %v378, %v377
      %v383 = vpack.c.b16 %v380, %v379
      %v384 = vpack.c.b16 %v381, %v381
      %v394 = vunpack.c.l.b16 %v363
      %v395 = vunpack.c.l.b16 %v364
      %v396 = vunpack.c.l.b16 %v365
      %v397 = vunpack.c.l.b16 %v366
      %v398 = vunpack.c.l.b16 %v367
      %v399 = vunpack.c.l.b16 %v368
      %v400 = vunpack.c.l.b16 %v369
      %v401 = vunpack.c.l.b16 %v370
      %v402 = vunpack.c.l.b16 %v371
      %v403 = vpack.c.b16 %v395, %v394
      %v404 = vpack.c.b16 %v397, %v396
      %v405 = vpack.c.b16 %v399, %v398
      %v406 = vpack.c.b16 %v401, %v400
      %v407 = vpack.c.b16 %v402, %v402
      %v413 = vsel %vm269, %v382, 0
      %v416 = vsel %vm269, %v383, 0
      %v419 = vsel %vm269, %v384, 0
      %v422 = vsel %vm279, %v407, 0
      %424 = vmatprep.subr.bf16.mxu0 0
      %425 = vmatpush1.bf16.msra.mxu0 %v403
      %426 = vmatprep.subr.bf16.mxu0 0
      %427 = vmatpush1.bf16.msra.mxu0 %v404
      %428 = vmatprep.subr.bf16.mxu0 0
      %429 = vmatpush1.bf16.msra.mxu0 %v405
      %430 = vmatprep.subr.bf16.mxu0 0
      %431 = vmatpush1.bf16.msra.mxu0 %v406
      %432 = vmatprep.subr.bf16.mxu0 0
      %433 = vmatpush1.bf16.msra.mxu0 %v422
      %434 = vmatprep.subr.bf16.mxu0 0
      %435 = vmatpush1.bf16.msra.mxu0 0
      %436 = vmatprep.subr.bf16.mxu0 0
      %437 = vmatpush1.bf16.msra.mxu0 0
      %438 = vmatprep.subr.bf16.mxu0 0
      %439 = vmatpush1.bf16.msra.mxu0 0
      %440 = vmatprep.subr.bf16.mxu0 0
      %441 = vmatpush1.bf16.msra.mxu0 0
      %442 = vmatprep.subr.bf16.mxu0 0
      %443 = vmatpush1.bf16.msra.mxu0 0
      %444 = vmatprep.subr.bf16.mxu0 0
      %445 = vmatpush1.bf16.msra.mxu0 0
      %446 = vmatprep.subr.bf16.mxu0 0
      %447 = vmatpush1.bf16.msra.mxu0 0
      %448 = vmatprep.subr.bf16.mxu0 0
      %449 = vmatpush1.bf16.msra.mxu0 0
      %450 = vmatprep.subr.bf16.mxu0 0
      %451 = vmatpush1.bf16.msra.mxu0 0
      %452 = vmatprep.subr.bf16.mxu0 0
      %453 = vmatpush1.bf16.msra.mxu0 0
      %454 = vmatprep.subr.bf16.mxu0 0
      %455 = vmatpush1.bf16.msra.mxu0 0
      %456 = vmatprep.mubr.bf16.mxu0 0
      %457 = vmatmul.mubr.bf16.gmra.mrb[0].mxu0 %v413
      %v458 = vpop.f32.mrb[0].mxu0
      %v459 = vadd.f32 0.0, %v458
      %v460 = vpop.f32.mrb[0].mxu0
      %v461 = vpop.f32.mrb[0].mxu0
      %v462 = vadd.f32 0.0, %v461
      %v463 = vpop.f32.mrb[0].mxu0
      %464 = vmatprep.mubr.bf16.mxu0 0
      %465 = vmatmul.mubr.bf16.gmra.mrb[0].mxu0 %v416
      %v466 = vpop.f32.mrb[0].mxu0
      %v467 = vadd.f32 0.0, %v466
      %v468 = vpop.f32.mrb[0].mxu0
      %v469 = vpop.f32.mrb[0].mxu0
      %v470 = vadd.f32 0.0, %v469
      %v471 = vpop.f32.mrb[0].mxu0
      %472 = vmatprep.mubr.bf16.mxu0 0
      %473 = vmatmul.mubr.bf16.gmra.mrb[0].mxu0 %v419
      %v474 = vpop.f32.mrb[0].mxu0
      %v475 = vadd.f32 0.0, %v474
      %v476 = vpop.f32.mrb[0].mxu0
      %v477 = vpop.f32.mrb[0].mxu0
      %v478 = vpop.f32.mrb[0].mxu0
      %479 = vdwg.mxu0
      %v480 = vadd.f32 %v357, %v459
      %v481 = vadd.f32 %v358, %v462
      %v482 = vadd.f32 %v359, %v467
      %v483 = vadd.f32 %v360, %v470
      %v484 = vadd.f32 %v361, %v475
      %485 = vst [vmem:[#allocation2] sm:$0xff] %v480
      %486 = vst [vmem:[#allocation2 + $0x8] sm:$0xff] %v481
      %487 = vst [vmem:[#allocation2 + $0x10] sm:$0xff] %v482
      %488 = vst [vmem:[#allocation2 + $0x18] sm:$0xff] %v483
      %489 = vst [vmem:[#allocation2 + $0x20] sm:$0xff] %v484
      %s490 = sadd.s32 %s195, 2
      %s491 = smul.addr %s490, 4
      %s492 = scalar_lea.vmem %s183, %s491
      %v493 = vld [vmem:[%s492] sm:$0xf]
      %v494 = vld [vmem:[%s492 + $0x4] sm:$0xf]
      %v495 = vld [vmem:[%s492 + $0x8] sm:$0xf]
      %v496 = vld [vmem:[%s492 + $0xc] sm:$0xf]
      %v497 = vld [vmem:[%s492 + $0x10] sm:$0xf]
      %v498 = vld [vmem:[#allocation2] sm:$0xff]
      %v499 = vld [vmem:[#allocation2 + $0x8] sm:$0xff]
      %v500 = vld [vmem:[#allocation2 + $0x10] sm:$0xff]
      %v501 = vld [vmem:[#allocation2 + $0x18] sm:$0xff]
      %v502 = vld [vmem:[#allocation2 + $0x20] sm:$0xff]
      %s503 = scalar_lea.vmem %s1, 72
      %v504 = vld [vmem:[%s503] sm:$0xf]
      %v505 = vld [vmem:[%s503 + $0x4] sm:$0xf]
      %v506 = vld [vmem:[%s503 + $0x8] sm:$0xf]
      %v507 = vld [vmem:[%s503 + $0xc] sm:$0xf]
      %v508 = vld [vmem:[%s503 + $0x10] sm:$0xf]
      %v509 = vld [vmem:[%s503 + $0x14] sm:$0xf]
      %v510 = vld [vmem:[%s503 + $0x18] sm:$0xf]
      %v511 = vld [vmem:[%s503 + $0x1c] sm:$0xf]
      %v512 = vld [vmem:[%s503 + $0x20] sm:$0xf]
      %v518 = vunpack.c.l.b16 %v493
      %v519 = vunpack.c.l.b16 %v494
      %v520 = vunpack.c.l.b16 %v495
      %v521 = vunpack.c.l.b16 %v496
      %v522 = vunpack.c.l.b16 %v497
      %v523 = vpack.c.b16 %v519, %v518
      %v524 = vpack.c.b16 %v521, %v520
      %v525 = vpack.c.b16 %v522, %v522
      %v535 = vunpack.c.l.b16 %v504
      %v536 = vunpack.c.l.b16 %v505
      %v537 = vunpack.c.l.b16 %v506
      %v538 = vunpack.c.l.b16 %v507
      %v539 = vunpack.c.l.b16 %v508
      %v540 = vunpack.c.l.b16 %v509
      %v541 = vunpack.c.l.b16 %v510
      %v542 = vunpack.c.l.b16 %v511
      %v543 = vunpack.c.l.b16 %v512
      %v544 = vpack.c.b16 %v536, %v535
      %v545 = vpack.c.b16 %v538, %v537
      %v546 = vpack.c.b16 %v540, %v539
      %v547 = vpack.c.b16 %v542, %v541
      %v548 = vpack.c.b16 %v543, %v543
      %v554 = vsel %vm269, %v523, 0
      %v557 = vsel %vm269, %v524, 0
      %v560 = vsel %vm269, %v525, 0
      %v563 = vsel %vm279, %v548, 0
      %565 = vmatprep.subr.bf16.mxu0 0
      %566 = vmatpush1.bf16.msra.mxu0 %v544
      %567 = vmatprep.subr.bf16.mxu0 0
      %568 = vmatpush1.bf16.msra.mxu0 %v545
      %569 = vmatprep.subr.bf16.mxu0 0
      %570 = vmatpush1.bf16.msra.mxu0 %v546
      %571 = vmatprep.subr.bf16.mxu0 0
      %572 = vmatpush1.bf16.msra.mxu0 %v547
      %573 = vmatprep.subr.bf16.mxu0 0
      %574 = vmatpush1.bf16.msra.mxu0 %v563
      %575 = vmatprep.subr.bf16.mxu0 0
      %576 = vmatpush1.bf16.msra.mxu0 0
      %577 = vmatprep.subr.bf16.mxu0 0
      %578 = vmatpush1.bf16.msra.mxu0 0
      %579 = vmatprep.subr.bf16.mxu0 0
      %580 = vmatpush1.bf16.msra.mxu0 0
      %581 = vmatprep.subr.bf16.mxu0 0
      %582 = vmatpush1.bf16.msra.mxu0 0
      %583 = vmatprep.subr.bf16.mxu0 0
      %584 = vmatpush1.bf16.msra.mxu0 0
      %585 = vmatprep.subr.bf16.mxu0 0
      %586 = vmatpush1.bf16.msra.mxu0 0
      %587 = vmatprep.subr.bf16.mxu0 0
      %588 = vmatpush1.bf16.msra.mxu0 0
      %589 = vmatprep.subr.bf16.mxu0 0
      %590 = vmatpush1.bf16.msra.mxu0 0
      %591 = vmatprep.subr.bf16.mxu0 0
      %592 = vmatpush1.bf16.msra.mxu0 0
      %593 = vmatprep.subr.bf16.mxu0 0
      %594 = vmatpush1.bf16.msra.mxu0 0
      %595 = vmatprep.subr.bf16.mxu0 0
      %596 = vmatpush1.bf16.msra.mxu0 0
      %597 = vmatprep.mubr.bf16.mxu0 0
      %598 = vmatmul.mubr.bf16.gmra.mrb[0].mxu0 %v554
      %v599 = vpop.f32.mrb[0].mxu0
      %v600 = vadd.f32 0.0, %v599
      %v601 = vpop.f32.mrb[0].mxu0
      %v602 = vpop.f32.mrb[0].mxu0
      %v603 = vadd.f32 0.0, %v602
      %v604 = vpop.f32.mrb[0].mxu0
      %605 = vmatprep.mubr.bf16.mxu0 0
      %606 = vmatmul.mubr.bf16.gmra.mrb[0].mxu0 %v557
      %v607 = vpop.f32.mrb[0].mxu0
      %v608 = vadd.f32 0.0, %v607
      %v609 = vpop.f32.mrb[0].mxu0
      %v610 = vpop.f32.mrb[0].mxu0
      %v611 = vadd.f32 0.0, %v610
      %v612 = vpop.f32.mrb[0].mxu0
      %613 = vmatprep.mubr.bf16.mxu0 0
      %614 = vmatmul.mubr.bf16.gmra.mrb[0].mxu0 %v560
      %v615 = vpop.f32.mrb[0].mxu0
      %v616 = vadd.f32 0.0, %v615
      %v617 = vpop.f32.mrb[0].mxu0
      %v618 = vpop.f32.mrb[0].mxu0
      %v619 = vpop.f32.mrb[0].mxu0
      %620 = vdwg.mxu0
      %v621 = vadd.f32 %v498, %v600
      %v622 = vadd.f32 %v499, %v603
      %v623 = vadd.f32 %v500, %v608
      %v624 = vadd.f32 %v501, %v611
      %v625 = vadd.f32 %v502, %v616
      %626 = vst [vmem:[#allocation2] sm:$0xff] %v621
      %627 = vst [vmem:[#allocation2 + $0x8] sm:$0xff] %v622
      %628 = vst [vmem:[#allocation2 + $0x10] sm:$0xff] %v623
      %629 = vst [vmem:[#allocation2 + $0x18] sm:$0xff] %v624
      %630 = vst [vmem:[#allocation2 + $0x20] sm:$0xff] %v625
      %s631 = sadd.s32 %s195, 3
      %s632 = smul.addr %s631, 4
      %s633 = scalar_lea.vmem %s183, %s632
      %v634 = vld [vmem:[%s633] sm:$0xf]
      %v635 = vld [vmem:[%s633 + $0x4] sm:$0xf]
      %v636 = vld [vmem:[%s633 + $0x8] sm:$0xf]
      %v637 = vld [vmem:[%s633 + $0xc] sm:$0xf]
      %v638 = vld [vmem:[%s633 + $0x10] sm:$0xf]
      %v639 = vld [vmem:[#allocation2] sm:$0xff]
      %v640 = vld [vmem:[#allocation2 + $0x8] sm:$0xff]
      %v641 = vld [vmem:[#allocation2 + $0x10] sm:$0xff]
      %v642 = vld [vmem:[#allocation2 + $0x18] sm:$0xff]
      %v643 = vld [vmem:[#allocation2 + $0x20] sm:$0xff]
      %s644 = scalar_lea.vmem %s1, 108
      %v645 = vld [vmem:[%s644] sm:$0xf]
      %v646 = vld [vmem:[%s644 + $0x4] sm:$0xf]
      %v647 = vld [vmem:[%s644 + $0x8] sm:$0xf]
      %v648 = vld [vmem:[%s644 + $0xc] sm:$0xf]
      %v649 = vld [vmem:[%s644 + $0x10] sm:$0xf]
      %v650 = vld [vmem:[%s644 + $0x14] sm:$0xf]
      %v651 = vld [vmem:[%s644 + $0x18] sm:$0xf]
      %v652 = vld [vmem:[%s644 + $0x1c] sm:$0xf]
      %v653 = vld [vmem:[%s644 + $0x20] sm:$0xf]
      %v659 = vunpack.c.l.b16 %v634
      %v660 = vunpack.c.l.b16 %v635
      %v661 = vunpack.c.l.b16 %v636
      %v662 = vunpack.c.l.b16 %v637
      %v663 = vunpack.c.l.b16 %v638
      %v664 = vpack.c.b16 %v660, %v659
      %v665 = vpack.c.b16 %v662, %v661
      %v666 = vpack.c.b16 %v663, %v663
      %v676 = vunpack.c.l.b16 %v645
      %v677 = vunpack.c.l.b16 %v646
      %v678 = vunpack.c.l.b16 %v647
      %v679 = vunpack.c.l.b16 %v648
      %v680 = vunpack.c.l.b16 %v649
      %v681 = vunpack.c.l.b16 %v650
      %v682 = vunpack.c.l.b16 %v651
      %v683 = vunpack.c.l.b16 %v652
      %v684 = vunpack.c.l.b16 %v653
      %v685 = vpack.c.b16 %v677, %v676
      %v686 = vpack.c.b16 %v679, %v678
      %v687 = vpack.c.b16 %v681, %v680
      %v688 = vpack.c.b16 %v683, %v682
      %v689 = vpack.c.b16 %v684, %v684
      %v695 = vsel %vm269, %v664, 0
      %v698 = vsel %vm269, %v665, 0
      %v701 = vsel %vm269, %v666, 0
      %v704 = vsel %vm279, %v689, 0
      %706 = vmatprep.subr.bf16.mxu0 0
      %707 = vmatpush1.bf16.msra.mxu0 %v685
      %708 = vmatprep.subr.bf16.mxu0 0
      %709 = vmatpush1.bf16.msra.mxu0 %v686
      %710 = vmatprep.subr.bf16.mxu0 0
      %711 = vmatpush1.bf16.msra.mxu0 %v687
      %712 = vmatprep.subr.bf16.mxu0 0
      %713 = vmatpush1.bf16.msra.mxu0 %v688
      %714 = vmatprep.subr.bf16.mxu0 0
      %715 = vmatpush1.bf16.msra.mxu0 %v704
      %716 = vmatprep.subr.bf16.mxu0 0
      %717 = vmatpush1.bf16.msra.mxu0 0
      %718 = vmatprep.subr.bf16.mxu0 0
      %719 = vmatpush1.bf16.msra.mxu0 0
      %720 = vmatprep.subr.bf16.mxu0 0
      %721 = vmatpush1.bf16.msra.mxu0 0
      %722 = vmatprep.subr.bf16.mxu0 0
      %723 = vmatpush1.bf16.msra.mxu0 0
      %724 = vmatprep.subr.bf16.mxu0 0
      %725 = vmatpush1.bf16.msra.mxu0 0
      %726 = vmatprep.subr.bf16.mxu0 0
      %727 = vmatpush1.bf16.msra.mxu0 0
      %728 = vmatprep.subr.bf16.mxu0 0
      %729 = vmatpush1.bf16.msra.mxu0 0
      %730 = vmatprep.subr.bf16.mxu0 0
      %731 = vmatpush1.bf16.msra.mxu0 0
      %732 = vmatprep.subr.bf16.mxu0 0
      %733 = vmatpush1.bf16.msra.mxu0 0
      %734 = vmatprep.subr.bf16.mxu0 0
      %735 = vmatpush1.bf16.msra.mxu0 0
      %736 = vmatprep.subr.bf16.mxu0 0
      %737 = vmatpush1.bf16.msra.mxu0 0
      %738 = vmatprep.mubr.bf16.mxu0 0
      %739 = vmatmul.mubr.bf16.gmra.mrb[0].mxu0 %v695
      %v740 = vpop.f32.mrb[0].mxu0
      %v741 = vadd.f32 0.0, %v740
      %v742 = vpop.f32.mrb[0].mxu0
      %v743 = vpop.f32.mrb[0].mxu0
      %v744 = vadd.f32 0.0, %v743
      %v745 = vpop.f32.mrb[0].mxu0
      %746 = vmatprep.mubr.bf16.mxu0 0
      %747 = vmatmul.mubr.bf16.gmra.mrb[0].mxu0 %v698
      %v748 = vpop.f32.mrb[0].mxu0
      %v749 = vadd.f32 0.0, %v748
      %v750 = vpop.f32.mrb[0].mxu0
      %v751 = vpop.f32.mrb[0].mxu0
      %v752 = vadd.f32 0.0, %v751
      %v753 = vpop.f32.mrb[0].mxu0
      %754 = vmatprep.mubr.bf16.mxu0 0
      %755 = vmatmul.mubr.bf16.gmra.mrb[0].mxu0 %v701
      %v756 = vpop.f32.mrb[0].mxu0
      %v757 = vadd.f32 0.0, %v756
      %v758 = vpop.f32.mrb[0].mxu0
      %v759 = vpop.f32.mrb[0].mxu0
      %v760 = vpop.f32.mrb[0].mxu0
      %761 = vdwg.mxu0
      %v762 = vadd.f32 %v639, %v741
      %v763 = vadd.f32 %v640, %v744
      %v764 = vadd.f32 %v641, %v749
      %v765 = vadd.f32 %v642, %v752
      %v766 = vadd.f32 %v643, %v757
      %767 = vst [vmem:[#allocation2] sm:$0xff] %v762
      %768 = vst [vmem:[#allocation2 + $0x8] sm:$0xff] %v763
      %769 = vst [vmem:[#allocation2 + $0x10] sm:$0xff] %v764
      %770 = vst [vmem:[#allocation2 + $0x18] sm:$0xff] %v765
      %771 = vst [vmem:[#allocation2 + $0x20] sm:$0xff] %v766
      %s772 = sadd.s32 %s195, 4
      %s773 = smul.addr %s772, 4
      %s774 = scalar_lea.vmem %s183, %s773
      %v775 = vld [vmem:[%s774] sm:$0xf]
      %v776 = vld [vmem:[%s774 + $0x4] sm:$0xf]
      %v777 = vld [vmem:[%s774 + $0x8] sm:$0xf]
      %v778 = vld [vmem:[%s774 + $0xc] sm:$0xf]
      %v779 = vld [vmem:[%s774 + $0x10] sm:$0xf]
      %v780 = vld [vmem:[#allocation2] sm:$0xff]
      %v781 = vld [vmem:[#allocation2 + $0x8] sm:$0xff]
      %v782 = vld [vmem:[#allocation2 + $0x10] sm:$0xff]
      %v783 = vld [vmem:[#allocation2 + $0x18] sm:$0xff]
      %v784 = vld [vmem:[#allocation2 + $0x20] sm:$0xff]
      %s785 = scalar_lea.vmem %s1, 144
      %v786 = vld [vmem:[%s785] sm:$0xf]
      %v787 = vld [vmem:[%s785 + $0x4] sm:$0xf]
      %v788 = vld [vmem:[%s785 + $0x8] sm:$0xf]
      %v789 = vld [vmem:[%s785 + $0xc] sm:$0xf]
      %v790 = vld [vmem:[%s785 + $0x10] sm:$0xf]
      %v791 = vld [vmem:[%s785 + $0x14] sm:$0xf]
      %v792 = vld [vmem:[%s785 + $0x18] sm:$0xf]
      %v793 = vld [vmem:[%s785 + $0x1c] sm:$0xf]
      %v794 = vld [vmem:[%s785 + $0x20] sm:$0xf]
      %v800 = vunpack.c.l.b16 %v775
      %v801 = vunpack.c.l.b16 %v776
      %v802 = vunpack.c.l.b16 %v777
      %v803 = vunpack.c.l.b16 %v778
      %v804 = vunpack.c.l.b16 %v779
      %v805 = vpack.c.b16 %v801, %v800
      %v806 = vpack.c.b16 %v803, %v802
      %v807 = vpack.c.b16 %v804, %v804
      %v817 = vunpack.c.l.b16 %v786
      %v818 = vunpack.c.l.b16 %v787
      %v819 = vunpack.c.l.b16 %v788
      %v820 = vunpack.c.l.b16 %v789
      %v821 = vunpack.c.l.b16 %v790
      %v822 = vunpack.c.l.b16 %v791
      %v823 = vunpack.c.l.b16 %v792
      %v824 = vunpack.c.l.b16 %v793
      %v825 = vunpack.c.l.b16 %v794
      %v826 = vpack.c.b16 %v818, %v817
      %v827 = vpack.c.b16 %v820, %v819
      %v828 = vpack.c.b16 %v822, %v821
      %v829 = vpack.c.b16 %v824, %v823
      %v830 = vpack.c.b16 %v825, %v825
      %v836 = vsel %vm269, %v805, 0
      %v839 = vsel %vm269, %v806, 0
      %v842 = vsel %vm269, %v807, 0
      %v845 = vsel %vm279, %v830, 0
      %847 = vmatprep.subr.bf16.mxu0 0
      %848 = vmatpush1.bf16.msra.mxu0 %v826
      %849 = vmatprep.subr.bf16.mxu0 0
      %850 = vmatpush1.bf16.msra.mxu0 %v827
      %851 = vmatprep.subr.bf16.mxu0 0
      %852 = vmatpush1.bf16.msra.mxu0 %v828
      %853 = vmatprep.subr.bf16.mxu0 0
      %854 = vmatpush1.bf16.msra.mxu0 %v829
      %855 = vmatprep.subr.bf16.mxu0 0
      %856 = vmatpush1.bf16.msra.mxu0 %v845
      %857 = vmatprep.subr.bf16.mxu0 0
      %858 = vmatpush1.bf16.msra.mxu0 0
      %859 = vmatprep.subr.bf16.mxu0 0
      %860 = vmatpush1.bf16.msra.mxu0 0
      %861 = vmatprep.subr.bf16.mxu0 0
      %862 = vmatpush1.bf16.msra.mxu0 0
      %863 = vmatprep.subr.bf16.mxu0 0
      %864 = vmatpush1.bf16.msra.mxu0 0
      %865 = vmatprep.subr.bf16.mxu0 0
      %866 = vmatpush1.bf16.msra.mxu0 0
      %867 = vmatprep.subr.bf16.mxu0 0
      %868 = vmatpush1.bf16.msra.mxu0 0
      %869 = vmatprep.subr.bf16.mxu0 0
      %870 = vmatpush1.bf16.msra.mxu0 0
      %871 = vmatprep.subr.bf16.mxu0 0
      %872 = vmatpush1.bf16.msra.mxu0 0
      %873 = vmatprep.subr.bf16.mxu0 0
      %874 = vmatpush1.bf16.msra.mxu0 0
      %875 = vmatprep.subr.bf16.mxu0 0
      %876 = vmatpush1.bf16.msra.mxu0 0
      %877 = vmatprep.subr.bf16.mxu0 0
      %878 = vmatpush1.bf16.msra.mxu0 0
      %879 = vmatprep.mubr.bf16.mxu0 0
      %880 = vmatmul.mubr.bf16.gmra.mrb[0].mxu0 %v836
      %v881 = vpop.f32.mrb[0].mxu0
      %v882 = vadd.f32 0.0, %v881
      %v883 = vpop.f32.mrb[0].mxu0
      %v884 = vpop.f32.mrb[0].mxu0
      %v885 = vadd.f32 0.0, %v884
      %v886 = vpop.f32.mrb[0].mxu0
      %887 = vmatprep.mubr.bf16.mxu0 0
      %888 = vmatmul.mubr.bf16.gmra.mrb[0].mxu0 %v839
      %v889 = vpop.f32.mrb[0].mxu0
      %v890 = vadd.f32 0.0, %v889
      %v891 = vpop.f32.mrb[0].mxu0
      %v892 = vpop.f32.mrb[0].mxu0
      %v893 = vadd.f32 0.0, %v892
      %v894 = vpop.f32.mrb[0].mxu0
      %895 = vmatprep.mubr.bf16.mxu0 0
      %896 = vmatmul.mubr.bf16.gmra.mrb[0].mxu0 %v842
      %v897 = vpop.f32.mrb[0].mxu0
      %v898 = vadd.f32 0.0, %v897
      %v899 = vpop.f32.mrb[0].mxu0
      %v900 = vpop.f32.mrb[0].mxu0
      %v901 = vpop.f32.mrb[0].mxu0
      %902 = vdwg.mxu0
      %v903 = vadd.f32 %v780, %v882
      %v904 = vadd.f32 %v781, %v885
      %v905 = vadd.f32 %v782, %v890
      %v906 = vadd.f32 %v783, %v893
      %v907 = vadd.f32 %v784, %v898
      %908 = vst [vmem:[#allocation2] sm:$0xff] %v903
      %909 = vst [vmem:[#allocation2 + $0x8] sm:$0xff] %v904
      %910 = vst [vmem:[#allocation2 + $0x10] sm:$0xff] %v905
      %911 = vst [vmem:[#allocation2 + $0x18] sm:$0xff] %v906
      %912 = vst [vmem:[#allocation2 + $0x20] sm:$0xff] %v907
      %s913 = sadd.s32 %s195, 5
      %s914 = smul.addr %s913, 4
      %s915 = scalar_lea.vmem %s183, %s914
      %v916 = vld [vmem:[%s915] sm:$0xf]
      %v917 = vld [vmem:[%s915 + $0x4] sm:$0xf]
      %v918 = vld [vmem:[%s915 + $0x8] sm:$0xf]
      %v919 = vld [vmem:[%s915 + $0xc] sm:$0xf]
      %v920 = vld [vmem:[%s915 + $0x10] sm:$0xf]
      %v921 = vld [vmem:[#allocation2] sm:$0xff]
      %v922 = vld [vmem:[#allocation2 + $0x8] sm:$0xff]
      %v923 = vld [vmem:[#allocation2 + $0x10] sm:$0xff]
      %v924 = vld [vmem:[#allocation2 + $0x18] sm:$0xff]
      %v925 = vld [vmem:[#allocation2 + $0x20] sm:$0xff]
      %s926 = scalar_lea.vmem %s1, 180
      %v927 = vld [vmem:[%s926] sm:$0xf]
      %v928 = vld [vmem:[%s926 + $0x4] sm:$0xf]
      %v929 = vld [vmem:[%s926 + $0x8] sm:$0xf]
      %v930 = vld [vmem:[%s926 + $0xc] sm:$0xf]
      %v931 = vld [vmem:[%s926 + $0x10] sm:$0xf]
      %v932 = vld [vmem:[%s926 + $0x14] sm:$0xf]
      %v933 = vld [vmem:[%s926 + $0x18] sm:$0xf]
      %v934 = vld [vmem:[%s926 + $0x1c] sm:$0xf]
      %v935 = vld [vmem:[%s926 + $0x20] sm:$0xf]
      %v941 = vunpack.c.l.b16 %v916
      %v942 = vunpack.c.l.b16 %v917
      %v943 = vunpack.c.l.b16 %v918
      %v944 = vunpack.c.l.b16 %v919
      %v945 = vunpack.c.l.b16 %v920
      %v946 = vpack.c.b16 %v942, %v941
      %v947 = vpack.c.b16 %v944, %v943
      %v948 = vpack.c.b16 %v945, %v945
      %v958 = vunpack.c.l.b16 %v927
      %v959 = vunpack.c.l.b16 %v928
      %v960 = vunpack.c.l.b16 %v929
      %v961 = vunpack.c.l.b16 %v930
      %v962 = vunpack.c.l.b16 %v931
      %v963 = vunpack.c.l.b16 %v932
      %v964 = vunpack.c.l.b16 %v933
      %v965 = vunpack.c.l.b16 %v934
      %v966 = vunpack.c.l.b16 %v935
      %v967 = vpack.c.b16 %v959, %v958
      %v968 = vpack.c.b16 %v961, %v960
      %v969 = vpack.c.b16 %v963, %v962
      %v970 = vpack.c.b16 %v965, %v964
      %v971 = vpack.c.b16 %v966, %v966
      %v977 = vsel %vm269, %v946, 0
      %v980 = vsel %vm269, %v947, 0
      %v983 = vsel %vm269, %v948, 0
      %v986 = vsel %vm279, %v971, 0
      %988 = vmatprep.subr.bf16.mxu0 0
      %989 = vmatpush1.bf16.msra.mxu0 %v967
      %990 = vmatprep.subr.bf16.mxu0 0
      %991 = vmatpush1.bf16.msra.mxu0 %v968
      %992 = vmatprep.subr.bf16.mxu0 0
      %993 = vmatpush1.bf16.msra.mxu0 %v969
      %994 = vmatprep.subr.bf16.mxu0 0
      %995 = vmatpush1.bf16.msra.mxu0 %v970
      %996 = vmatprep.subr.bf16.mxu0 0
      %997 = vmatpush1.bf16.msra.mxu0 %v986
      %998 = vmatprep.subr.bf16.mxu0 0
      %999 = vmatpush1.bf16.msra.mxu0 0
      %1000 = vmatprep.subr.bf16.mxu0 0
      %1001 = vmatpush1.bf16.msra.mxu0 0
      %1002 = vmatprep.subr.bf16.mxu0 0
      %1003 = vmatpush1.bf16.msra.mxu0 0
      %1004 = vmatprep.subr.bf16.mxu0 0
      %1005 = vmatpush1.bf16.msra.mxu0 0
      %1006 = vmatprep.subr.bf16.mxu0 0
      %1007 = vmatpush1.bf16.msra.mxu0 0
      %1008 = vmatprep.subr.bf16.mxu0 0
      %1009 = vmatpush1.bf16.msra.mxu0 0
      %1010 = vmatprep.subr.bf16.mxu0 0
      %1011 = vmatpush1.bf16.msra.mxu0 0
      %1012 = vmatprep.subr.bf16.mxu0 0
      %1013 = vmatpush1.bf16.msra.mxu0 0
      %1014 = vmatprep.subr.bf16.mxu0 0
      %1015 = vmatpush1.bf16.msra.mxu0 0
      %1016 = vmatprep.subr.bf16.mxu0 0
      %1017 = vmatpush1.bf16.msra.mxu0 0
      %1018 = vmatprep.subr.bf16.mxu0 0
      %1019 = vmatpush1.bf16.msra.mxu0 0
      %1020 = vmatprep.mubr.bf16.mxu0 0
      %1021 = vmatmul.mubr.bf16.gmra.mrb[0].mxu0 %v977
      %v1022 = vpop.f32.mrb[0].mxu0
      %v1023 = vadd.f32 0.0, %v1022
      %v1024 = vpop.f32.mrb[0].mxu0
      %v1025 = vpop.f32.mrb[0].mxu0
      %v1026 = vadd.f32 0.0, %v1025
      %v1027 = vpop.f32.mrb[0].mxu0
      %1028 = vmatprep.mubr.bf16.mxu0 0
      %1029 = vmatmul.mubr.bf16.gmra.mrb[0].mxu0 %v980
      %v1030 = vpop.f32.mrb[0].mxu0
      %v1031 = vadd.f32 0.0, %v1030
      %v1032 = vpop.f32.mrb[0].mxu0
      %v1033 = vpop.f32.mrb[0].mxu0
      %v1034 = vadd.f32 0.0, %v1033
      %v1035 = vpop.f32.mrb[0].mxu0
      %1036 = vmatprep.mubr.bf16.mxu0 0
      %1037 = vmatmul.mubr.bf16.gmra.mrb[0].mxu0 %v983
      %v1038 = vpop.f32.mrb[0].mxu0
      %v1039 = vadd.f32 0.0, %v1038
      %v1040 = vpop.f32.mrb[0].mxu0
      %v1041 = vpop.f32.mrb[0].mxu0
      %v1042 = vpop.f32.mrb[0].mxu0
      %1043 = vdwg.mxu0
      %v1044 = vadd.f32 %v921, %v1023
      %v1045 = vadd.f32 %v922, %v1026
      %v1046 = vadd.f32 %v923, %v1031
      %v1047 = vadd.f32 %v924, %v1034
      %v1048 = vadd.f32 %v925, %v1039
      %1049 = vst [vmem:[#allocation2] sm:$0xff] %v1044
      %1050 = vst [vmem:[#allocation2 + $0x8] sm:$0xff] %v1045
      %1051 = vst [vmem:[#allocation2 + $0x10] sm:$0xff] %v1046
      %1052 = vst [vmem:[#allocation2 + $0x18] sm:$0xff] %v1047
      %1053 = vst [vmem:[#allocation2 + $0x20] sm:$0xff] %v1048
      %s1054 = sadd.s32 %s195, 6
      %s1055 = smul.addr %s1054, 4
      %s1056 = scalar_lea.vmem %s183, %s1055
      %v1057 = vld [vmem:[%s1056] sm:$0xf]
      %v1058 = vld [vmem:[%s1056 + $0x4] sm:$0xf]
      %v1059 = vld [vmem:[%s1056 + $0x8] sm:$0xf]
      %v1060 = vld [vmem:[%s1056 + $0xc] sm:$0xf]
      %v1061 = vld [vmem:[%s1056 + $0x10] sm:$0xf]
      %v1062 = vld [vmem:[#allocation2] sm:$0xff]
      %v1063 = vld [vmem:[#allocation2 + $0x8] sm:$0xff]
      %v1064 = vld [vmem:[#allocation2 + $0x10] sm:$0xff]
      %v1065 = vld [vmem:[#allocation2 + $0x18] sm:$0xff]
      %v1066 = vld [vmem:[#allocation2 + $0x20] sm:$0xff]
      %s1067 = scalar_lea.vmem %s1, 216
      %v1068 = vld [vmem:[%s1067] sm:$0xf]
      %v1069 = vld [vmem:[%s1067 + $0x4] sm:$0xf]
      %v1070 = vld [vmem:[%s1067 + $0x8] sm:$0xf]
      %v1071 = vld [vmem:[%s1067 + $0xc] sm:$0xf]
      %v1072 = vld [vmem:[%s1067 + $0x10] sm:$0xf]
      %v1073 = vld [vmem:[%s1067 + $0x14] sm:$0xf]
      %v1074 = vld [vmem:[%s1067 + $0x18] sm:$0xf]
      %v1075 = vld [vmem:[%s1067 + $0x1c] sm:$0xf]
      %v1076 = vld [vmem:[%s1067 + $0x20] sm:$0xf]
      %v1082 = vunpack.c.l.b16 %v1057
      %v1083 = vunpack.c.l.b16 %v1058
      %v1084 = vunpack.c.l.b16 %v1059
      %v1085 = vunpack.c.l.b16 %v1060
      %v1086 = vunpack.c.l.b16 %v1061
      %v1087 = vpack.c.b16 %v1083, %v1082
      %v1088 = vpack.c.b16 %v1085, %v1084
      %v1089 = vpack.c.b16 %v1086, %v1086
      %v1099 = vunpack.c.l.b16 %v1068
      %v1100 = vunpack.c.l.b16 %v1069
      %v1101 = vunpack.c.l.b16 %v1070
      %v1102 = vunpack.c.l.b16 %v1071
      %v1103 = vunpack.c.l.b16 %v1072
      %v1104 = vunpack.c.l.b16 %v1073
      %v1105 = vunpack.c.l.b16 %v1074
      %v1106 = vunpack.c.l.b16 %v1075
      %v1107 = vunpack.c.l.b16 %v1076
      %v1108 = vpack.c.b16 %v1100, %v1099
      %v1109 = vpack.c.b16 %v1102, %v1101
      %v1110 = vpack.c.b16 %v1104, %v1103
      %v1111 = vpack.c.b16 %v1106, %v1105
      %v1112 = vpack.c.b16 %v1107, %v1107
      %v1118 = vsel %vm269, %v1087, 0
      %v1121 = vsel %vm269, %v1088, 0
      %v1124 = vsel %vm269, %v1089, 0
      %v1127 = vsel %vm279, %v1112, 0
      %1129 = vmatprep.subr.bf16.mxu0 0
      %1130 = vmatpush1.bf16.msra.mxu0 %v1108
      %1131 = vmatprep.subr.bf16.mxu0 0
      %1132 = vmatpush1.bf16.msra.mxu0 %v1109
      %1133 = vmatprep.subr.bf16.mxu0 0
      %1134 = vmatpush1.bf16.msra.mxu0 %v1110
      %1135 = vmatprep.subr.bf16.mxu0 0
      %1136 = vmatpush1.bf16.msra.mxu0 %v1111
      %1137 = vmatprep.subr.bf16.mxu0 0
      %1138 = vmatpush1.bf16.msra.mxu0 %v1127
      %1139 = vmatprep.subr.bf16.mxu0 0
      %1140 = vmatpush1.bf16.msra.mxu0 0
      %1141 = vmatprep.subr.bf16.mxu0 0
      %1142 = vmatpush1.bf16.msra.mxu0 0
      %1143 = vmatprep.subr.bf16.mxu0 0
      %1144 = vmatpush1.bf16.msra.mxu0 0
      %1145 = vmatprep.subr.bf16.mxu0 0
      %1146 = vmatpush1.bf16.msra.mxu0 0
      %1147 = vmatprep.subr.bf16.mxu0 0
      %1148 = vmatpush1.bf16.msra.mxu0 0
      %1149 = vmatprep.subr.bf16.mxu0 0
      %1150 = vmatpush1.bf16.msra.mxu0 0
      %1151 = vmatprep.subr.bf16.mxu0 0
      %1152 = vmatpush1.bf16.msra.mxu0 0
      %1153 = vmatprep.subr.bf16.mxu0 0
      %1154 = vmatpush1.bf16.msra.mxu0 0
      %1155 = vmatprep.subr.bf16.mxu0 0
      %1156 = vmatpush1.bf16.msra.mxu0 0
      %1157 = vmatprep.subr.bf16.mxu0 0
      %1158 = vmatpush1.bf16.msra.mxu0 0
      %1159 = vmatprep.subr.bf16.mxu0 0
      %1160 = vmatpush1.bf16.msra.mxu0 0
      %1161 = vmatprep.mubr.bf16.mxu0 0
      %1162 = vmatmul.mubr.bf16.gmra.mrb[0].mxu0 %v1118
      %v1163 = vpop.f32.mrb[0].mxu0
      %v1164 = vadd.f32 0.0, %v1163
      %v1165 = vpop.f32.mrb[0].mxu0
      %v1166 = vpop.f32.mrb[0].mxu0
      %v1167 = vadd.f32 0.0, %v1166
      %v1168 = vpop.f32.mrb[0].mxu0
      %1169 = vmatprep.mubr.bf16.mxu0 0
      %1170 = vmatmul.mubr.bf16.gmra.mrb[0].mxu0 %v1121
      %v1171 = vpop.f32.mrb[0].mxu0
      %v1172 = vadd.f32 0.0, %v1171
      %v1173 = vpop.f32.mrb[0].mxu0
      %v1174 = vpop.f32.mrb[0].mxu0
      %v1175 = vadd.f32 0.0, %v1174
      %v1176 = vpop.f32.mrb[0].mxu0
      %1177 = vmatprep.mubr.bf16.mxu0 0
      %1178 = vmatmul.mubr.bf16.gmra.mrb[0].mxu0 %v1124
      %v1179 = vpop.f32.mrb[0].mxu0
      %v1180 = vadd.f32 0.0, %v1179
      %v1181 = vpop.f32.mrb[0].mxu0
      %v1182 = vpop.f32.mrb[0].mxu0
      %v1183 = vpop.f32.mrb[0].mxu0
      %1184 = vdwg.mxu0
      %v1185 = vadd.f32 %v1062, %v1164
      %v1186 = vadd.f32 %v1063, %v1167
      %v1187 = vadd.f32 %v1064, %v1172
      %v1188 = vadd.f32 %v1065, %v1175
      %v1189 = vadd.f32 %v1066, %v1180
      %1190 = vst [vmem:[#allocation2] sm:$0xff] %v1185
      %1191 = vst [vmem:[#allocation2 + $0x8] sm:$0xff] %v1186
      %1192 = vst [vmem:[#allocation2 + $0x10] sm:$0xff] %v1187
      %1193 = vst [vmem:[#allocation2 + $0x18] sm:$0xff] %v1188
      %1194 = vst [vmem:[#allocation2 + $0x20] sm:$0xff] %v1189
      %s1195 = sadd.s32 %s195, 7
      %s1196 = smul.addr %s1195, 4
      %s1197 = scalar_lea.vmem %s183, %s1196
      %v1198 = vld [vmem:[%s1197] sm:$0xf]
      %v1199 = vld [vmem:[%s1197 + $0x4] sm:$0xf]
      %v1200 = vld [vmem:[%s1197 + $0x8] sm:$0xf]
      %v1201 = vld [vmem:[%s1197 + $0xc] sm:$0xf]
      %v1202 = vld [vmem:[%s1197 + $0x10] sm:$0xf]
      %v1203 = vld [vmem:[#allocation2] sm:$0xff]
      %v1204 = vld [vmem:[#allocation2 + $0x8] sm:$0xff]
      %v1205 = vld [vmem:[#allocation2 + $0x10] sm:$0xff]
      %v1206 = vld [vmem:[#allocation2 + $0x18] sm:$0xff]
      %v1207 = vld [vmem:[#allocation2 + $0x20] sm:$0xff]
      %s1208 = scalar_lea.vmem %s1, 252
      %v1209 = vld [vmem:[%s1208] sm:$0xf]
      %v1210 = vld [vmem:[%s1208 + $0x4] sm:$0xf]
      %v1211 = vld [vmem:[%s1208 + $0x8] sm:$0xf]
      %v1212 = vld [vmem:[%s1208 + $0xc] sm:$0xf]
      %v1213 = vld [vmem:[%s1208 + $0x10] sm:$0xf]
      %v1214 = vld [vmem:[%s1208 + $0x14] sm:$0xf]
      %v1215 = vld [vmem:[%s1208 + $0x18] sm:$0xf]
      %v1216 = vld [vmem:[%s1208 + $0x1c] sm:$0xf]
      %v1217 = vld [vmem:[%s1208 + $0x20] sm:$0xf]
      %v1223 = vunpack.c.l.b16 %v1198
      %v1224 = vunpack.c.l.b16 %v1199
      %v1225 = vunpack.c.l.b16 %v1200
      %v1226 = vunpack.c.l.b16 %v1201
      %v1227 = vunpack.c.l.b16 %v1202
      %v1228 = vpack.c.b16 %v1224, %v1223
      %v1229 = vpack.c.b16 %v1226, %v1225
      %v1230 = vpack.c.b16 %v1227, %v1227
      %v1240 = vunpack.c.l.b16 %v1209
      %v1241 = vunpack.c.l.b16 %v1210
      %v1242 = vunpack.c.l.b16 %v1211
      %v1243 = vunpack.c.l.b16 %v1212
      %v1244 = vunpack.c.l.b16 %v1213
      %v1245 = vunpack.c.l.b16 %v1214
      %v1246 = vunpack.c.l.b16 %v1215
      %v1247 = vunpack.c.l.b16 %v1216
      %v1248 = vunpack.c.l.b16 %v1217
      %v1249 = vpack.c.b16 %v1241, %v1240
      %v1250 = vpack.c.b16 %v1243, %v1242
      %v1251 = vpack.c.b16 %v1245, %v1244
      %v1252 = vpack.c.b16 %v1247, %v1246
      %v1253 = vpack.c.b16 %v1248, %v1248
      %v1259 = vsel %vm269, %v1228, 0
      %v1262 = vsel %vm269, %v1229, 0
      %v1265 = vsel %vm269, %v1230, 0
      %v1268 = vsel %vm279, %v1253, 0
      %1270 = vmatprep.subr.bf16.mxu0 0
      %1271 = vmatpush1.bf16.msra.mxu0 %v1249
      %1272 = vmatprep.subr.bf16.mxu0 0
      %1273 = vmatpush1.bf16.msra.mxu0 %v1250
      %1274 = vmatprep.subr.bf16.mxu0 0
      %1275 = vmatpush1.bf16.msra.mxu0 %v1251
      %1276 = vmatprep.subr.bf16.mxu0 0
      %1277 = vmatpush1.bf16.msra.mxu0 %v1252
      %1278 = vmatprep.subr.bf16.mxu0 0
      %1279 = vmatpush1.bf16.msra.mxu0 %v1268
      %1280 = vmatprep.subr.bf16.mxu0 0
      %1281 = vmatpush1.bf16.msra.mxu0 0
      %1282 = vmatprep.subr.bf16.mxu0 0
      %1283 = vmatpush1.bf16.msra.mxu0 0
      %1284 = vmatprep.subr.bf16.mxu0 0
      %1285 = vmatpush1.bf16.msra.mxu0 0
      %1286 = vmatprep.subr.bf16.mxu0 0
      %1287 = vmatpush1.bf16.msra.mxu0 0
      %1288 = vmatprep.subr.bf16.mxu0 0
      %1289 = vmatpush1.bf16.msra.mxu0 0
      %1290 = vmatprep.subr.bf16.mxu0 0
      %1291 = vmatpush1.bf16.msra.mxu0 0
      %1292 = vmatprep.subr.bf16.mxu0 0
      %1293 = vmatpush1.bf16.msra.mxu0 0
      %1294 = vmatprep.subr.bf16.mxu0 0
      %1295 = vmatpush1.bf16.msra.mxu0 0
      %1296 = vmatprep.subr.bf16.mxu0 0
      %1297 = vmatpush1.bf16.msra.mxu0 0
      %1298 = vmatprep.subr.bf16.mxu0 0
      %1299 = vmatpush1.bf16.msra.mxu0 0
      %1300 = vmatprep.subr.bf16.mxu0 0
      %1301 = vmatpush1.bf16.msra.mxu0 0
      %1302 = vmatprep.mubr.bf16.mxu0 0
      %1303 = vmatmul.mubr.bf16.gmra.mrb[0].mxu0 %v1259
      %v1304 = vpop.f32.mrb[0].mxu0
      %v1305 = vadd.f32 0.0, %v1304
      %v1306 = vpop.f32.mrb[0].mxu0
      %v1307 = vpop.f32.mrb[0].mxu0
      %v1308 = vadd.f32 0.0, %v1307
      %v1309 = vpop.f32.mrb[0].mxu0
      %1310 = vmatprep.mubr.bf16.mxu0 0
      %1311 = vmatmul.mubr.bf16.gmra.mrb[0].mxu0 %v1262
      %v1312 = vpop.f32.mrb[0].mxu0
      %v1313 = vadd.f32 0.0, %v1312
      %v1314 = vpop.f32.mrb[0].mxu0
      %v1315 = vpop.f32.mrb[0].mxu0
      %v1316 = vadd.f32 0.0, %v1315
      %v1317 = vpop.f32.mrb[0].mxu0
      %1318 = vmatprep.mubr.bf16.mxu0 0
      %1319 = vmatmul.mubr.bf16.gmra.mrb[0].mxu0 %v1265
      %v1320 = vpop.f32.mrb[0].mxu0
      %v1321 = vadd.f32 0.0, %v1320
      %v1322 = vpop.f32.mrb[0].mxu0
      %v1323 = vpop.f32.mrb[0].mxu0
      %v1324 = vpop.f32.mrb[0].mxu0
      %1325 = vdwg.mxu0
      %v1326 = vadd.f32 %v1203, %v1305
      %v1327 = vadd.f32 %v1204, %v1308
      %v1328 = vadd.f32 %v1205, %v1313
      %v1329 = vadd.f32 %v1206, %v1316
      %v1330 = vadd.f32 %v1207, %v1321
      %1331 = vst [vmem:[#allocation2] sm:$0xff] %v1326
      %1332 = vst [vmem:[#allocation2 + $0x8] sm:$0xff] %v1327
      %1333 = vst [vmem:[#allocation2 + $0x10] sm:$0xff] %v1328
      %1334 = vst [vmem:[#allocation2 + $0x18] sm:$0xff] %v1329
      %1335 = vst [vmem:[#allocation2 + $0x20] sm:$0xff] %v1330
      %s1336 = sadd.s32 %s195, 8
      %s1337 = smul.addr %s1336, 4
      %s1338 = scalar_lea.vmem %s183, %s1337
      %v1339 = vld [vmem:[%s1338] sm:$0xf]
      %v1340 = vld [vmem:[%s1338 + $0x4] sm:$0xf]
      %v1341 = vld [vmem:[%s1338 + $0x8] sm:$0xf]
      %v1342 = vld [vmem:[%s1338 + $0xc] sm:$0xf]
      %v1343 = vld [vmem:[%s1338 + $0x10] sm:$0xf]
      %v1344 = vld [vmem:[#allocation2] sm:$0xff]
      %v1345 = vld [vmem:[#allocation2 + $0x8] sm:$0xff]
      %v1346 = vld [vmem:[#allocation2 + $0x10] sm:$0xff]
      %v1347 = vld [vmem:[#allocation2 + $0x18] sm:$0xff]
      %v1348 = vld [vmem:[#allocation2 + $0x20] sm:$0xff]
      %s1349 = scalar_lea.vmem %s1, 288
      %v1350 = vld [vmem:[%s1349] sm:$0xf]
      %v1351 = vld [vmem:[%s1349 + $0x4] sm:$0xf]
      %v1352 = vld [vmem:[%s1349 + $0x8] sm:$0xf]
      %v1353 = vld [vmem:[%s1349 + $0xc] sm:$0xf]
      %v1354 = vld [vmem:[%s1349 + $0x10] sm:$0xf]
      %v1355 = vld [vmem:[%s1349 + $0x14] sm:$0xf]
      %v1356 = vld [vmem:[%s1349 + $0x18] sm:$0xf]
      %v1357 = vld [vmem:[%s1349 + $0x1c] sm:$0xf]
      %v1358 = vld [vmem:[%s1349 + $0x20] sm:$0xf]
      %v1364 = vunpack.c.l.b16 %v1339
      %v1365 = vunpack.c.l.b16 %v1340
      %v1366 = vunpack.c.l.b16 %v1341
      %v1367 = vunpack.c.l.b16 %v1342
      %v1368 = vunpack.c.l.b16 %v1343
      %v1369 = vpack.c.b16 %v1365, %v1364
      %v1370 = vpack.c.b16 %v1367, %v1366
      %v1371 = vpack.c.b16 %v1368, %v1368
      %v1381 = vunpack.c.l.b16 %v1350
      %v1382 = vunpack.c.l.b16 %v1351
      %v1383 = vunpack.c.l.b16 %v1352
      %v1384 = vunpack.c.l.b16 %v1353
      %v1385 = vunpack.c.l.b16 %v1354
      %v1386 = vunpack.c.l.b16 %v1355
      %v1387 = vunpack.c.l.b16 %v1356
      %v1388 = vunpack.c.l.b16 %v1357
      %v1389 = vunpack.c.l.b16 %v1358
      %v1390 = vpack.c.b16 %v1382, %v1381
      %v1391 = vpack.c.b16 %v1384, %v1383
      %v1392 = vpack.c.b16 %v1386, %v1385
      %v1393 = vpack.c.b16 %v1388, %v1387
      %v1394 = vpack.c.b16 %v1389, %v1389
      %v1400 = vsel %vm269, %v1369, 0
      %v1403 = vsel %vm269, %v1370, 0
      %v1406 = vsel %vm269, %v1371, 0
      %v1409 = vsel %vm279, %v1394, 0
      %1411 = vmatprep.subr.bf16.mxu0 0
      %1412 = vmatpush1.bf16.msra.mxu0 %v1390
      %1413 = vmatprep.subr.bf16.mxu0 0
      %1414 = vmatpush1.bf16.msra.mxu0 %v1391
      %1415 = vmatprep.subr.bf16.mxu0 0
      %1416 = vmatpush1.bf16.msra.mxu0 %v1392
      %1417 = vmatprep.subr.bf16.mxu0 0
      %1418 = vmatpush1.bf16.msra.mxu0 %v1393
      %1419 = vmatprep.subr.bf16.mxu0 0
      %1420 = vmatpush1.bf16.msra.mxu0 %v1409
      %1421 = vmatprep.subr.bf16.mxu0 0
      %1422 = vmatpush1.bf16.msra.mxu0 0
      %1423 = vmatprep.subr.bf16.mxu0 0
      %1424 = vmatpush1.bf16.msra.mxu0 0
      %1425 = vmatprep.subr.bf16.mxu0 0
      %1426 = vmatpush1.bf16.msra.mxu0 0
      %1427 = vmatprep.subr.bf16.mxu0 0
      %1428 = vmatpush1.bf16.msra.mxu0 0
      %1429 = vmatprep.subr.bf16.mxu0 0
      %1430 = vmatpush1.bf16.msra.mxu0 0
      %1431 = vmatprep.subr.bf16.mxu0 0
      %1432 = vmatpush1.bf16.msra.mxu0 0
      %1433 = vmatprep.subr.bf16.mxu0 0
      %1434 = vmatpush1.bf16.msra.mxu0 0
      %1435 = vmatprep.subr.bf16.mxu0 0
      %1436 = vmatpush1.bf16.msra.mxu0 0
      %1437 = vmatprep.subr.bf16.mxu0 0
      %1438 = vmatpush1.bf16.msra.mxu0 0
      %1439 = vmatprep.subr.bf16.mxu0 0
      %1440 = vmatpush1.bf16.msra.mxu0 0
      %1441 = vmatprep.subr.bf16.mxu0 0
      %1442 = vmatpush1.bf16.msra.mxu0 0
      %1443 = vmatprep.mubr.bf16.mxu0 0
      %1444 = vmatmul.mubr.bf16.gmra.mrb[0].mxu0 %v1400
      %v1445 = vpop.f32.mrb[0].mxu0
      %v1446 = vadd.f32 0.0, %v1445
      %v1447 = vpop.f32.mrb[0].mxu0
      %v1448 = vpop.f32.mrb[0].mxu0
      %v1449 = vadd.f32 0.0, %v1448
      %v1450 = vpop.f32.mrb[0].mxu0
      %1451 = vmatprep.mubr.bf16.mxu0 0
      %1452 = vmatmul.mubr.bf16.gmra.mrb[0].mxu0 %v1403
      %v1453 = vpop.f32.mrb[0].mxu0
      %v1454 = vadd.f32 0.0, %v1453
      %v1455 = vpop.f32.mrb[0].mxu0
      %v1456 = vpop.f32.mrb[0].mxu0
      %v1457 = vadd.f32 0.0, %v1456
      %v1458 = vpop.f32.mrb[0].mxu0
      %1459 = vmatprep.mubr.bf16.mxu0 0
      %1460 = vmatmul.mubr.bf16.gmra.mrb[0].mxu0 %v1406
      %v1461 = vpop.f32.mrb[0].mxu0
      %v1462 = vadd.f32 0.0, %v1461
      %v1463 = vpop.f32.mrb[0].mxu0
      %v1464 = vpop.f32.mrb[0].mxu0
      %v1465 = vpop.f32.mrb[0].mxu0
      %1466 = vdwg.mxu0
      %v1467 = vadd.f32 %v1344, %v1446
      %v1468 = vadd.f32 %v1345, %v1449
      %v1469 = vadd.f32 %v1346, %v1454
      %v1470 = vadd.f32 %v1347, %v1457
      %v1471 = vadd.f32 %v1348, %v1462
      %1472 = vst [vmem:[#allocation2] sm:$0xff] %v1467
      %1473 = vst [vmem:[#allocation2 + $0x8] sm:$0xff] %v1468
      %1474 = vst [vmem:[#allocation2 + $0x10] sm:$0xff] %v1469
      %1475 = vst [vmem:[#allocation2 + $0x18] sm:$0xff] %v1470
      %1476 = vst [vmem:[#allocation2 + $0x20] sm:$0xff] %v1471
      %s1477 = sadd.s32 %s195, 9
      %s1478 = smul.addr %s1477, 4
      %s1479 = scalar_lea.vmem %s183, %s1478
      %v1480 = vld [vmem:[%s1479] sm:$0xf]
      %v1481 = vld [vmem:[%s1479 + $0x4] sm:$0xf]
      %v1482 = vld [vmem:[%s1479 + $0x8] sm:$0xf]
      %v1483 = vld [vmem:[%s1479 + $0xc] sm:$0xf]
      %v1484 = vld [vmem:[%s1479 + $0x10] sm:$0xf]
      %v1485 = vld [vmem:[#allocation2] sm:$0xff]
      %v1486 = vld [vmem:[#allocation2 + $0x8] sm:$0xff]
      %v1487 = vld [vmem:[#allocation2 + $0x10] sm:$0xff]
      %v1488 = vld [vmem:[#allocation2 + $0x18] sm:$0xff]
      %v1489 = vld [vmem:[#allocation2 + $0x20] sm:$0xff]
      %s1490 = scalar_lea.vmem %s1, 324
      %v1491 = vld [vmem:[%s1490] sm:$0xf]
      %v1492 = vld [vmem:[%s1490 + $0x4] sm:$0xf]
      %v1493 = vld [vmem:[%s1490 + $0x8] sm:$0xf]
      %v1494 = vld [vmem:[%s1490 + $0xc] sm:$0xf]
      %v1495 = vld [vmem:[%s1490 + $0x10] sm:$0xf]
      %v1496 = vld [vmem:[%s1490 + $0x14] sm:$0xf]
      %v1497 = vld [vmem:[%s1490 + $0x18] sm:$0xf]
      %v1498 = vld [vmem:[%s1490 + $0x1c] sm:$0xf]
      %v1499 = vld [vmem:[%s1490 + $0x20] sm:$0xf]
      %v1505 = vunpack.c.l.b16 %v1480
      %v1506 = vunpack.c.l.b16 %v1481
      %v1507 = vunpack.c.l.b16 %v1482
      %v1508 = vunpack.c.l.b16 %v1483
      %v1509 = vunpack.c.l.b16 %v1484
      %v1510 = vpack.c.b16 %v1506, %v1505
      %v1511 = vpack.c.b16 %v1508, %v1507
      %v1512 = vpack.c.b16 %v1509, %v1509
      %v1522 = vunpack.c.l.b16 %v1491
      %v1523 = vunpack.c.l.b16 %v1492
      %v1524 = vunpack.c.l.b16 %v1493
      %v1525 = vunpack.c.l.b16 %v1494
      %v1526 = vunpack.c.l.b16 %v1495
      %v1527 = vunpack.c.l.b16 %v1496
      %v1528 = vunpack.c.l.b16 %v1497
      %v1529 = vunpack.c.l.b16 %v1498
      %v1530 = vunpack.c.l.b16 %v1499
      %v1531 = vpack.c.b16 %v1523, %v1522
      %v1532 = vpack.c.b16 %v1525, %v1524
      %v1533 = vpack.c.b16 %v1527, %v1526
      %v1534 = vpack.c.b16 %v1529, %v1528
      %v1535 = vpack.c.b16 %v1530, %v1530
      %v1541 = vsel %vm269, %v1510, 0
      %v1544 = vsel %vm269, %v1511, 0
      %v1547 = vsel %vm269, %v1512, 0
      %v1550 = vsel %vm279, %v1535, 0
      %1552 = vmatprep.subr.bf16.mxu0 0
      %1553 = vmatpush1.bf16.msra.mxu0 %v1531
      %1554 = vmatprep.subr.bf16.mxu0 0
      %1555 = vmatpush1.bf16.msra.mxu0 %v1532
      %1556 = vmatprep.subr.bf16.mxu0 0
      %1557 = vmatpush1.bf16.msra.mxu0 %v1533
      %1558 = vmatprep.subr.bf16.mxu0 0
      %1559 = vmatpush1.bf16.msra.mxu0 %v1534
      %1560 = vmatprep.subr.bf16.mxu0 0
      %1561 = vmatpush1.bf16.msra.mxu0 %v1550
      %1562 = vmatprep.subr.bf16.mxu0 0
      %1563 = vmatpush1.bf16.msra.mxu0 0
      %1564 = vmatprep.subr.bf16.mxu0 0
      %1565 = vmatpush1.bf16.msra.mxu0 0
      %1566 = vmatprep.subr.bf16.mxu0 0
      %1567 = vmatpush1.bf16.msra.mxu0 0
      %1568 = vmatprep.subr.bf16.mxu0 0
      %1569 = vmatpush1.bf16.msra.mxu0 0
      %1570 = vmatprep.subr.bf16.mxu0 0
      %1571 = vmatpush1.bf16.msra.mxu0 0
      %1572 = vmatprep.subr.bf16.mxu0 0
      %1573 = vmatpush1.bf16.msra.mxu0 0
      %1574 = vmatprep.subr.bf16.mxu0 0
      %1575 = vmatpush1.bf16.msra.mxu0 0
      %1576 = vmatprep.subr.bf16.mxu0 0
      %1577 = vmatpush1.bf16.msra.mxu0 0
      %1578 = vmatprep.subr.bf16.mxu0 0
      %1579 = vmatpush1.bf16.msra.mxu0 0
      %1580 = vmatprep.subr.bf16.mxu0 0
      %1581 = vmatpush1.bf16.msra.mxu0 0
      %1582 = vmatprep.subr.bf16.mxu0 0
      %1583 = vmatpush1.bf16.msra.mxu0 0
      %1584 = vmatprep.mubr.bf16.mxu0 0
      %1585 = vmatmul.mubr.bf16.gmra.mrb[0].mxu0 %v1541
      %v1586 = vpop.f32.mrb[0].mxu0
      %v1587 = vadd.f32 0.0, %v1586
      %v1588 = vpop.f32.mrb[0].mxu0
      %v1589 = vpop.f32.mrb[0].mxu0
      %v1590 = vadd.f32 0.0, %v1589
      %v1591 = vpop.f32.mrb[0].mxu0
      %1592 = vmatprep.mubr.bf16.mxu0 0
      %1593 = vmatmul.mubr.bf16.gmra.mrb[0].mxu0 %v1544
      %v1594 = vpop.f32.mrb[0].mxu0
      %v1595 = vadd.f32 0.0, %v1594
      %v1596 = vpop.f32.mrb[0].mxu0
      %v1597 = vpop.f32.mrb[0].mxu0
      %v1598 = vadd.f32 0.0, %v1597
      %v1599 = vpop.f32.mrb[0].mxu0
      %1600 = vmatprep.mubr.bf16.mxu0 0
      %1601 = vmatmul.mubr.bf16.gmra.mrb[0].mxu0 %v1547
      %v1602 = vpop.f32.mrb[0].mxu0
      %v1603 = vadd.f32 0.0, %v1602
      %v1604 = vpop.f32.mrb[0].mxu0
      %v1605 = vpop.f32.mrb[0].mxu0
      %v1606 = vpop.f32.mrb[0].mxu0
      %1607 = vdwg.mxu0
      %v1608 = vadd.f32 %v1485, %v1587
      %v1609 = vadd.f32 %v1486, %v1590
      %v1610 = vadd.f32 %v1487, %v1595
      %v1611 = vadd.f32 %v1488, %v1598
      %v1612 = vadd.f32 %v1489, %v1603
      %1613 = vst [vmem:[#allocation2] sm:$0xff] %v1608
      %1614 = vst [vmem:[#allocation2 + $0x8] sm:$0xff] %v1609
      %1615 = vst [vmem:[#allocation2 + $0x10] sm:$0xff] %v1610
      %1616 = vst [vmem:[#allocation2 + $0x18] sm:$0xff] %v1611
      %1617 = vst [vmem:[#allocation2 + $0x20] sm:$0xff] %v1612
      %s1618 = sadd.s32 %s195, 10
      %s1619 = smul.addr %s1618, 4
      %s1620 = scalar_lea.vmem %s183, %s1619
      %v1621 = vld [vmem:[%s1620] sm:$0xf]
      %v1622 = vld [vmem:[%s1620 + $0x4] sm:$0xf]
      %v1623 = vld [vmem:[%s1620 + $0x8] sm:$0xf]
      %v1624 = vld [vmem:[%s1620 + $0xc] sm:$0xf]
      %v1625 = vld [vmem:[%s1620 + $0x10] sm:$0xf]
      %v1626 = vld [vmem:[#allocation2] sm:$0xff]
      %v1627 = vld [vmem:[#allocation2 + $0x8] sm:$0xff]
      %v1628 = vld [vmem:[#allocation2 + $0x10] sm:$0xff]
      %v1629 = vld [vmem:[#allocation2 + $0x18] sm:$0xff]
      %v1630 = vld [vmem:[#allocation2 + $0x20] sm:$0xff]
      %s1631 = scalar_lea.vmem %s1, 360
      %v1632 = vld [vmem:[%s1631] sm:$0xf]
      %v1633 = vld [vmem:[%s1631 + $0x4] sm:$0xf]
      %v1634 = vld [vmem:[%s1631 + $0x8] sm:$0xf]
      %v1635 = vld [vmem:[%s1631 + $0xc] sm:$0xf]
      %v1636 = vld [vmem:[%s1631 + $0x10] sm:$0xf]
      %v1637 = vld [vmem:[%s1631 + $0x14] sm:$0xf]
      %v1638 = vld [vmem:[%s1631 + $0x18] sm:$0xf]
      %v1639 = vld [vmem:[%s1631 + $0x1c] sm:$0xf]
      %v1640 = vld [vmem:[%s1631 + $0x20] sm:$0xf]
      %v1646 = vunpack.c.l.b16 %v1621
      %v1647 = vunpack.c.l.b16 %v1622
      %v1648 = vunpack.c.l.b16 %v1623
      %v1649 = vunpack.c.l.b16 %v1624
      %v1650 = vunpack.c.l.b16 %v1625
      %v1651 = vpack.c.b16 %v1647, %v1646
      %v1652 = vpack.c.b16 %v1649, %v1648
      %v1653 = vpack.c.b16 %v1650, %v1650
      %v1663 = vunpack.c.l.b16 %v1632
      %v1664 = vunpack.c.l.b16 %v1633
      %v1665 = vunpack.c.l.b16 %v1634
      %v1666 = vunpack.c.l.b16 %v1635
      %v1667 = vunpack.c.l.b16 %v1636
      %v1668 = vunpack.c.l.b16 %v1637
      %v1669 = vunpack.c.l.b16 %v1638
      %v1670 = vunpack.c.l.b16 %v1639
      %v1671 = vunpack.c.l.b16 %v1640
      %v1672 = vpack.c.b16 %v1664, %v1663
      %v1673 = vpack.c.b16 %v1666, %v1665
      %v1674 = vpack.c.b16 %v1668, %v1667
      %v1675 = vpack.c.b16 %v1670, %v1669
      %v1676 = vpack.c.b16 %v1671, %v1671
      %v1682 = vsel %vm269, %v1651, 0
      %v1685 = vsel %vm269, %v1652, 0
      %v1688 = vsel %vm269, %v1653, 0
      %v1691 = vsel %vm279, %v1676, 0
      %1693 = vmatprep.subr.bf16.mxu0 0
      %1694 = vmatpush1.bf16.msra.mxu0 %v1672
      %1695 = vmatprep.subr.bf16.mxu0 0
      %1696 = vmatpush1.bf16.msra.mxu0 %v1673
      %1697 = vmatprep.subr.bf16.mxu0 0
      %1698 = vmatpush1.bf16.msra.mxu0 %v1674
      %1699 = vmatprep.subr.bf16.mxu0 0
      %1700 = vmatpush1.bf16.msra.mxu0 %v1675
      %1701 = vmatprep.subr.bf16.mxu0 0
      %1702 = vmatpush1.bf16.msra.mxu0 %v1691
      %1703 = vmatprep.subr.bf16.mxu0 0
      %1704 = vmatpush1.bf16.msra.mxu0 0
      %1705 = vmatprep.subr.bf16.mxu0 0
      %1706 = vmatpush1.bf16.msra.mxu0 0
      %1707 = vmatprep.subr.bf16.mxu0 0
      %1708 = vmatpush1.bf16.msra.mxu0 0
      %1709 = vmatprep.subr.bf16.mxu0 0
      %1710 = vmatpush1.bf16.msra.mxu0 0
      %1711 = vmatprep.subr.bf16.mxu0 0
      %1712 = vmatpush1.bf16.msra.mxu0 0
      %1713 = vmatprep.subr.bf16.mxu0 0
      %1714 = vmatpush1.bf16.msra.mxu0 0
      %1715 = vmatprep.subr.bf16.mxu0 0
      %1716 = vmatpush1.bf16.msra.mxu0 0
      %1717 = vmatprep.subr.bf16.mxu0 0
      %1718 = vmatpush1.bf16.msra.mxu0 0
      %1719 = vmatprep.subr.bf16.mxu0 0
      %1720 = vmatpush1.bf16.msra.mxu0 0
      %1721 = vmatprep.subr.bf16.mxu0 0
      %1722 = vmatpush1.bf16.msra.mxu0 0
      %1723 = vmatprep.subr.bf16.mxu0 0
      %1724 = vmatpush1.bf16.msra.mxu0 0
      %1725 = vmatprep.mubr.bf16.mxu0 0
      %1726 = vmatmul.mubr.bf16.gmra.mrb[0].mxu0 %v1682
      %v1727 = vpop.f32.mrb[0].mxu0
      %v1728 = vadd.f32 0.0, %v1727
      %v1729 = vpop.f32.mrb[0].mxu0
      %v1730 = vpop.f32.mrb[0].mxu0
      %v1731 = vadd.f32 0.0, %v1730
      %v1732 = vpop.f32.mrb[0].mxu0
      %1733 = vmatprep.mubr.bf16.mxu0 0
      %1734 = vmatmul.mubr.bf16.gmra.mrb[0].mxu0 %v1685
      %v1735 = vpop.f32.mrb[0].mxu0
      %v1736 = vadd.f32 0.0, %v1735
      %v1737 = vpop.f32.mrb[0].mxu0
      %v1738 = vpop.f32.mrb[0].mxu0
      %v1739 = vadd.f32 0.0, %v1738
      %v1740 = vpop.f32.mrb[0].mxu0
      %1741 = vmatprep.mubr.bf16.mxu0 0
      %1742 = vmatmul.mubr.bf16.gmra.mrb[0].mxu0 %v1688
      %v1743 = vpop.f32.mrb[0].mxu0
      %v1744 = vadd.f32 0.0, %v1743
      %v1745 = vpop.f32.mrb[0].mxu0
      %v1746 = vpop.f32.mrb[0].mxu0
      %v1747 = vpop.f32.mrb[0].mxu0
      %1748 = vdwg.mxu0
      %v1749 = vadd.f32 %v1626, %v1728
      %v1750 = vadd.f32 %v1627, %v1731
      %v1751 = vadd.f32 %v1628, %v1736
      %v1752 = vadd.f32 %v1629, %v1739
      %v1753 = vadd.f32 %v1630, %v1744
      %1754 = vst [vmem:[#allocation2] sm:$0xff] %v1749
      %1755 = vst [vmem:[#allocation2 + $0x8] sm:$0xff] %v1750
      %1756 = vst [vmem:[#allocation2 + $0x10] sm:$0xff] %v1751
      %1757 = vst [vmem:[#allocation2 + $0x18] sm:$0xff] %v1752
      %1758 = vst [vmem:[#allocation2 + $0x20] sm:$0xff] %v1753
      %s1759 = sadd.s32 %s195, 11
      %s1760 = smul.addr %s1759, 4
      %s1761 = scalar_lea.vmem %s183, %s1760
      %v1762 = vld [vmem:[%s1761] sm:$0xf]
      %v1763 = vld [vmem:[%s1761 + $0x4] sm:$0xf]
      %v1764 = vld [vmem:[%s1761 + $0x8] sm:$0xf]
      %v1765 = vld [vmem:[%s1761 + $0xc] sm:$0xf]
      %v1766 = vld [vmem:[%s1761 + $0x10] sm:$0xf]
      %v1767 = vld [vmem:[#allocation2] sm:$0xff]
      %v1768 = vld [vmem:[#allocation2 + $0x8] sm:$0xff]
      %v1769 = vld [vmem:[#allocation2 + $0x10] sm:$0xff]
      %v1770 = vld [vmem:[#allocation2 + $0x18] sm:$0xff]
      %v1771 = vld [vmem:[#allocation2 + $0x20] sm:$0xff]
      %s1772 = scalar_lea.vmem %s1, 396
      %v1773 = vld [vmem:[%s1772] sm:$0xf]
      %v1774 = vld [vmem:[%s1772 + $0x4] sm:$0xf]
      %v1775 = vld [vmem:[%s1772 + $0x8] sm:$0xf]
      %v1776 = vld [vmem:[%s1772 + $0xc] sm:$0xf]
      %v1777 = vld [vmem:[%s1772 + $0x10] sm:$0xf]
      %v1778 = vld [vmem:[%s1772 + $0x14] sm:$0xf]
      %v1779 = vld [vmem:[%s1772 + $0x18] sm:$0xf]
      %v1780 = vld [vmem:[%s1772 + $0x1c] sm:$0xf]
      %v1781 = vld [vmem:[%s1772 + $0x20] sm:$0xf]
      %v1787 = vunpack.c.l.b16 %v1762
      %v1788 = vunpack.c.l.b16 %v1763
      %v1789 = vunpack.c.l.b16 %v1764
      %v1790 = vunpack.c.l.b16 %v1765
      %v1791 = vunpack.c.l.b16 %v1766
      %v1792 = vpack.c.b16 %v1788, %v1787
      %v1793 = vpack.c.b16 %v1790, %v1789
      %v1794 = vpack.c.b16 %v1791, %v1791
      %v1804 = vunpack.c.l.b16 %v1773
      %v1805 = vunpack.c.l.b16 %v1774
      %v1806 = vunpack.c.l.b16 %v1775
      %v1807 = vunpack.c.l.b16 %v1776
      %v1808 = vunpack.c.l.b16 %v1777
      %v1809 = vunpack.c.l.b16 %v1778
      %v1810 = vunpack.c.l.b16 %v1779
      %v1811 = vunpack.c.l.b16 %v1780
      %v1812 = vunpack.c.l.b16 %v1781
      %v1813 = vpack.c.b16 %v1805, %v1804
      %v1814 = vpack.c.b16 %v1807, %v1806
      %v1815 = vpack.c.b16 %v1809, %v1808
      %v1816 = vpack.c.b16 %v1811, %v1810
      %v1817 = vpack.c.b16 %v1812, %v1812
      %v1823 = vsel %vm269, %v1792, 0
      %v1826 = vsel %vm269, %v1793, 0
      %v1829 = vsel %vm269, %v1794, 0
      %v1832 = vsel %vm279, %v1817, 0
      %1834 = vmatprep.subr.bf16.mxu0 0
      %1835 = vmatpush1.bf16.msra.mxu0 %v1813
      %1836 = vmatprep.subr.bf16.mxu0 0
      %1837 = vmatpush1.bf16.msra.mxu0 %v1814
      %1838 = vmatprep.subr.bf16.mxu0 0
      %1839 = vmatpush1.bf16.msra.mxu0 %v1815
      %1840 = vmatprep.subr.bf16.mxu0 0
      %1841 = vmatpush1.bf16.msra.mxu0 %v1816
      %1842 = vmatprep.subr.bf16.mxu0 0
      %1843 = vmatpush1.bf16.msra.mxu0 %v1832
      %1844 = vmatprep.subr.bf16.mxu0 0
      %1845 = vmatpush1.bf16.msra.mxu0 0
      %1846 = vmatprep.subr.bf16.mxu0 0
      %1847 = vmatpush1.bf16.msra.mxu0 0
      %1848 = vmatprep.subr.bf16.mxu0 0
      %1849 = vmatpush1.bf16.msra.mxu0 0
      %1850 = vmatprep.subr.bf16.mxu0 0
      %1851 = vmatpush1.bf16.msra.mxu0 0
      %1852 = vmatprep.subr.bf16.mxu0 0
      %1853 = vmatpush1.bf16.msra.mxu0 0
      %1854 = vmatprep.subr.bf16.mxu0 0
      %1855 = vmatpush1.bf16.msra.mxu0 0
      %1856 = vmatprep.subr.bf16.mxu0 0
      %1857 = vmatpush1.bf16.msra.mxu0 0
      %1858 = vmatprep.subr.bf16.mxu0 0
      %1859 = vmatpush1.bf16.msra.mxu0 0
      %1860 = vmatprep.subr.bf16.mxu0 0
      %1861 = vmatpush1.bf16.msra.mxu0 0
      %1862 = vmatprep.subr.bf16.mxu0 0
      %1863 = vmatpush1.bf16.msra.mxu0 0
      %1864 = vmatprep.subr.bf16.mxu0 0
      %1865 = vmatpush1.bf16.msra.mxu0 0
      %1866 = vmatprep.mubr.bf16.mxu0 0
      %1867 = vmatmul.mubr.bf16.gmra.mrb[0].mxu0 %v1823
      %v1868 = vpop.f32.mrb[0].mxu0
      %v1869 = vadd.f32 0.0, %v1868
      %v1870 = vpop.f32.mrb[0].mxu0
      %v1871 = vpop.f32.mrb[0].mxu0
      %v1872 = vadd.f32 0.0, %v1871
      %v1873 = vpop.f32.mrb[0].mxu0
      %1874 = vmatprep.mubr.bf16.mxu0 0
      %1875 = vmatmul.mubr.bf16.gmra.mrb[0].mxu0 %v1826
      %v1876 = vpop.f32.mrb[0].mxu0
      %v1877 = vadd.f32 0.0, %v1876
      %v1878 = vpop.f32.mrb[0].mxu0
      %v1879 = vpop.f32.mrb[0].mxu0
      %v1880 = vadd.f32 0.0, %v1879
      %v1881 = vpop.f32.mrb[0].mxu0
      %1882 = vmatprep.mubr.bf16.mxu0 0
      %1883 = vmatmul.mubr.bf16.gmra.mrb[0].mxu0 %v1829
      %v1884 = vpop.f32.mrb[0].mxu0
      %v1885 = vadd.f32 0.0, %v1884
      %v1886 = vpop.f32.mrb[0].mxu0
      %v1887 = vpop.f32.mrb[0].mxu0
      %v1888 = vpop.f32.mrb[0].mxu0
      %1889 = vdwg.mxu0
      %v1890 = vadd.f32 %v1767, %v1869
      %v1891 = vadd.f32 %v1768, %v1872
      %v1892 = vadd.f32 %v1769, %v1877
      %v1893 = vadd.f32 %v1770, %v1880
      %v1894 = vadd.f32 %v1771, %v1885
      %1895 = vst [vmem:[#allocation2] sm:$0xff] %v1890
      %1896 = vst [vmem:[#allocation2 + $0x8] sm:$0xff] %v1891
      %1897 = vst [vmem:[#allocation2 + $0x10] sm:$0xff] %v1892
      %1898 = vst [vmem:[#allocation2 + $0x18] sm:$0xff] %v1893
      %1899 = vst [vmem:[#allocation2 + $0x20] sm:$0xff] %v1894
      %v1900 = vld [vmem:[#allocation2] sm:$0xff]
      %v1901 = vld [vmem:[#allocation2 + $0x8] sm:$0xff]
      %v1902 = vld [vmem:[#allocation2 + $0x10] sm:$0xff]
      %v1903 = vld [vmem:[#allocation2 + $0x18] sm:$0xff]
      %v1904 = vld [vmem:[#allocation2 + $0x20] sm:$0xff]
      %1905 = vst [vmem:[%s192] sm:$0xff] %v1900
      %1906 = vst [vmem:[%s192 + $0x8] sm:$0xff] %v1901
      %1907 = vst [vmem:[%s192 + $0x10] sm:$0xff] %v1902
      %1908 = vst [vmem:[%s192 + $0x18] sm:$0xff] %v1903
      %1909 = vst [vmem:[%s192 + $0x20] sm:$0xff] %v1904
      %s1910 = smul.u32 5, %s19
      %p1911 = scmp.lt.s32.totalorder %s18, 1
      %s1912 = scalar_select %p1911, %s18, 1
      %p1913 = scmp.lt.s32.totalorder %s1910, 4
      %s1914 = scalar_select %p1913, %s1910, 4
      %s1915 = smul.addr %s1912, 5
      %s1916 = sadd.s32 %s1914, %s1915
      %s1917 = smul.addr %s1916, 8
      %s1918 = scalar_lea.vmem %s3, %s1917
      // Predicated region
      $region33: #{input_gate_conv.1} parent=31 // pred_check
        %p1919 = pneg %p114
      $region34: #{input_gate_conv.1} parent=31 // pred_check_branch
        %1921 = sbr.rel (%p1919) target = $region36
      $region35: #{input_gate_conv.1} parent=31 // pred_region
        %s1922 = smul.u32 5, %s19
      $region36: #{input_gate_conv.1} parent=31 // pred_fallthru
        _
    $region32: #{input_gate_conv.1} parent=5 // pred_fallthru
      _
    %p1923 = scmp.le.s32.totalorder 2, %s9
    // Predicated region
    $region37: #{input_gate_conv.1} parent=5 // pred_check
      %p1924 = pneg %p1923
    $region38: #{input_gate_conv.1} parent=5 // pred_check_branch
      %1926 = sbr.rel (%p1924) target = $region40
    $region39: #{input_gate_conv.1} parent=5 // pred_region
      %s1927 = ssub.s32 %s9, 2
      // Predicated region
      $region41: #{input_gate_conv.1} parent=39 // pred_check
        %p1928 = pneg %p120
      $region42: #{input_gate_conv.1} parent=39 // pred_check_branch
        %1930 = sbr.rel (%p1928) target = $region44
      $region43: #{input_gate_conv.1} parent=39 // pred_region
        %s1931 = smul.u32 5, %s21
        %p1932 = scmp.lt.s32.totalorder %s20, 1
        %s1933 = scalar_select %p1932, %s20, 1
        %p1934 = scmp.lt.s32.totalorder %s1931, 4
        %s1935 = scalar_select %p1934, %s1931, 4
        %s1936 = smul.addr %s1933, 5
        %s1937 = sadd.s32 %s1935, %s1936
        %s1938 = smul.addr %s1937, 8
        %s1939 = scalar_lea.vmem %s3, %s1938
      $region44: #{input_gate_conv.1} parent=39 // pred_fallthru
        _
    $region40: #{input_gate_conv.1} parent=5 // pred_fallthru
      _
  $region6: #{input_gate_conv.1} parent=0 // loop_footer
    %s13 = sadd.s32 1, %s9
  $region7: #{input_gate_conv.1} parent=0 // loop_footer_branch
    %8 = sbr.rel target = $region3
  $region8: #{input_gate_conv.1} parent=0 // loop_exit
    _

</llo_original>
